<compile_context>
chip_gen: v7x
topology: tpu7x:2x2x1
jax: 0.10.0
libtpu: 0.0.40
codegen_flags: <defaults>
</compile_context>

<pallas_src>
import jax
import jax.numpy as jnp
from jax.experimental import pallas as pl
from jax.experimental.pallas import tpu as pltpu


def _resmlp_block_kernel(
    x_ref,        # (M, D) f32   current row-block (Bt batch elems x S patches)
    ts_ref,       # (1, D) f32   folded token-mix per-channel scale (a1 * ls1)
    wpb_ref,      # (M, M) bf16  block-diagonal kron(I_Bt, Wp)
    addtok_ref,   # (M, D) f32   folded token-mix additive constant
    w1_ref,       # (D, H) bf16  folded a2 * W1
    b1_ref,       # (1, H) f32   folded be2 @ W1 + b1
    w2_ref,       # (H, D) bf16  folded W2 * ls2
    b2_ref,       # (1, D) f32   folded b2 * ls2
    o_ref,        # (M, D)       output
):
    x = x_ref[...]                                                       # f32 (M, D)

    # ---- token-mixing sublayer (one wide MXU matmul, bf16 operands) ----
    u = (x * ts_ref[...]).astype(jnp.bfloat16)                           # VPU + cast
    v = jnp.dot(wpb_ref[...], u, preferred_element_type=jnp.float32)     # MXU (M,M)@(M,D)
    x1 = x + v + addtok_ref[...]                                         # VPU (f32)

    # ---- channel-MLP sublayer (two big MXU matmuls, bf16 operands) ----
    h = jnp.dot(x1.astype(jnp.bfloat16), w1_ref[...],
                preferred_element_type=jnp.float32)                      # MXU (M,D)@(D,H)
    h = jax.nn.gelu(h + b1_ref[...], approximate=True)                   # VPU/EUP (f32)
    m = jnp.dot(h.astype(jnp.bfloat16), w2_ref[...],
                preferred_element_type=jnp.float32)                      # MXU (M,H)@(H,D)
    y = x1 + m + b2_ref[...]                                             # VPU (f32)

    o_ref[...] = y.astype(o_ref.dtype)


def _pick_batch_tile(B, S, target_rows=128):
    """Largest Bt dividing B with Bt*S <= target_rows (>=1)."""
    bt = max(1, min(B, max(1, target_rows // S)))
    while B % bt != 0:
        bt -= 1
    return bt


def resmlp_block(x, params, *, batch_tile=None):
    """Fused Pallas ResMLP block forward. x: (B, S, D) float32."""
    (a1, be1, wp, bp, ls1, a2, be2, w1, b1, w2, b2, ls2) = params
    B, S, D = x.shape
    H = w1.shape[1]

    Bt = _pick_batch_tile(B, S) if batch_tile is None else batch_tile
    assert B % Bt == 0, "batch tile must divide batch"
    M = Bt * S
    grid = (B // Bt,)

    f32 = jnp.float32
    bf16 = jnp.bfloat16

    # ---- wrapper-side parameter folding (tiny, done once under jit/XLA) ----
    # token mix:  x1 = x + ls1*(Wp @ (a1*x + be1) + bp)
    #           = x + Wp_big @ ((a1*ls1)*x)  +  add_tok
    tok_scale = (a1 * ls1).astype(f32).reshape(1, D)
    wp_big = jnp.kron(jnp.eye(Bt, dtype=f32), wp.astype(f32)).astype(bf16)   # (M, M)
    add_tok = ls1[None, :] * (wp.sum(axis=1)[:, None] * be1[None, :] + bp[:, None])
    add_tok = jnp.tile(add_tok.astype(f32), (Bt, 1))                          # (M, D)
    # channel MLP: x2 = x1 + gelu(x1 @ (a2*W1) + (be2@W1 + b1)) @ (W2*ls2) + b2*ls2
    w1f = (a2[:, None] * w1).astype(bf16)                                     # (D, H)
    b1f = (be2 @ w1 + b1).astype(f32).reshape(1, H)
    w2f = (w2 * ls2[None, :]).astype(bf16)                                    # (H, D)
    b2f = (b2 * ls2).astype(f32).reshape(1, D)

    # Flat (B*S, D) view: free reshape, makes lane-dense (M, D) row blocks.
    x2d = x.reshape(B * S, D)

    def const_spec(shape):
        # Full-extent weight block; constant index_map => VMEM-resident across
        # grid steps (no re-DMA).
        return pl.BlockSpec(shape, lambda i: (0, 0))

    grid_spec = pltpu.PrefetchScalarGridSpec(
        num_scalar_prefetch=0,
        grid=grid,
        in_specs=[
            pl.BlockSpec((M, D), lambda i: (i, 0)),   # x row block
            const_spec((1, D)),                       # tok_scale
            const_spec((M, M)),                       # wp_big
            const_spec((M, D)),                       # add_tok
            const_spec((D, H)),                       # w1f
            const_spec((1, H)),                       # b1f
            const_spec((H, D)),                       # w2f
            const_spec((1, D)),                       # b2f
        ],
        out_specs=pl.BlockSpec((M, D), lambda i: (i, 0)),
    )

    # VMEM budget sized to the actual footprint (double-buffered x/out blocks +
    # double-buffered weights) plus slack; stays far below v7x's 64 MiB.
    nbytes = lambda a: a.size * a.dtype.itemsize
    weight_bytes = sum(nbytes(a) for a in
                       (tok_scale, wp_big, add_tok, w1f, b1f, w2f, b2f))
    block_bytes = M * D * x.dtype.itemsize
    vmem_bytes = 2 * (2 * block_bytes) + 2 * weight_bytes + (8 << 20)
    vmem_bytes = int(min(vmem_bytes, 48 << 20))

    out2d = pl.pallas_call(
        _resmlp_block_kernel,
        out_shape=jax.ShapeDtypeStruct((B * S, D), x.dtype),
        grid_spec=grid_spec,
        compiler_params=pltpu.CompilerParams(
            dimension_semantics=("parallel",),   # shard row blocks across TCs (v7x)
            vmem_limit_bytes=vmem_bytes,
        ),
    )(x2d, tok_scale, wp_big, add_tok, w1f, b1f, w2f, b2f)

    return out2d.reshape(B, S, D)


def resmlp_ref(x, params):
    """Pure-JAX reference (unfolded, f32 HIGHEST) for correctness checking."""
    (a1, be1, wp, bp, ls1, a2, be2, w1, b1, w2, b2, ls2) = params
    hp = jax.lax.Precision.HIGHEST
    u = x * a1 + be1
    v = jnp.einsum("st,btd->bsd", wp, u, precision=hp) + bp[None, :, None]
    x = x + ls1 * v
    w = x * a2 + be2
    h = jax.nn.gelu(jnp.einsum("bsd,dh->bsh", w, w1, precision=hp) + b1,
                    approximate=True)
    m = jnp.einsum("bsh,hd->bsd", h, w2, precision=hp) + b2
    return x + ls2 * m


if __name__ == "__main__":
    key = jax.random.PRNGKey(0)
    ks = jax.random.split(key, 12)

    # Small but lane-dense shapes; B=32 so the batch-tiled grid has 4 steps
    # (Bt=8 -> M = Bt*S = 128 rows per MXU pass). D=128 channels, H=4*D hidden.
    B, S, D, H = 32, 16, 128, 512

    x = jax.random.normal(ks[0], (B, S, D), jnp.float32)

    a1 = 1.0 + 0.1 * jax.random.normal(ks[1], (D,), jnp.float32)
    be1 = 0.1 * jax.random.normal(ks[2], (D,), jnp.float32)
    wp = jax.random.normal(ks[3], (S, S), jnp.float32) / jnp.sqrt(S)
    bp = 0.1 * jax.random.normal(ks[4], (S,), jnp.float32)
    ls1 = 0.1 * jnp.ones((D,), jnp.float32)
    a2 = 1.0 + 0.1 * jax.random.normal(ks[5], (D,), jnp.float32)
    be2 = 0.1 * jax.random.normal(ks[6], (D,), jnp.float32)
    w1 = jax.random.normal(ks[7], (D, H), jnp.float32) / jnp.sqrt(D)
    b1 = 0.1 * jax.random.normal(ks[8], (H,), jnp.float32)
    w2 = jax.random.normal(ks[9], (H, D), jnp.float32) / jnp.sqrt(H)
    b2 = 0.1 * jax.random.normal(ks[10], (D,), jnp.float32)
    ls2 = 0.1 * jnp.ones((D,), jnp.float32)

    params = (a1, be1, wp, bp, ls1, a2, be2, w1, b1, w2, b2, ls2)

    y = resmlp_block(x, params)
    jax.block_until_ready(y)

    y_ref = resmlp_ref(x, params)
    jax.block_until_ready(y_ref)

    assert y.shape == x.shape and y.dtype == x.dtype
    max_err = float(jnp.max(jnp.abs(y - y_ref)))
    assert bool(jnp.allclose(y, y_ref, rtol=1e-2, atol=1e-2)), (
        "max abs err = %r" % max_err)
    print("KERNEL_OK")
</pallas_src>

<mosaic_0001>
module attributes {stable_mosaic.version = 11 : i64} {
  func.func @_resmlp_block_kernel(%arg0: i32, %arg1: memref<128x128xf32, #tpu.memory_space<vmem>>, %arg2: memref<1x128xf32, #tpu.memory_space<vmem>>, %arg3: memref<128x128xbf16, #tpu.memory_space<vmem>>, %arg4: memref<128x128xf32, #tpu.memory_space<vmem>>, %arg5: memref<128x512xbf16, #tpu.memory_space<vmem>>, %arg6: memref<1x512xf32, #tpu.memory_space<vmem>>, %arg7: memref<512x128xbf16, #tpu.memory_space<vmem>>, %arg8: memref<1x128xf32, #tpu.memory_space<vmem>>, %arg9: memref<128x128xf32, #tpu.memory_space<vmem>>) attributes {dimension_semantics = [#tpu.dimension_semantics<parallel>], iteration_bounds = array<i64: 4>, scalar_prefetch = 0 : i64, scratch_operands = 0 : i64, tpu.core_type = #tpu.core_type<tc>, window_params = [{transform_indices = @transform_0, window_bounds = array<i64: 128, 128>}, {pipeline_mode = #tpu.pipeline_mode<synchronous>, transform_indices = @transform_1, window_bounds = array<i64: 1, 128>}, {pipeline_mode = #tpu.pipeline_mode<synchronous>, transform_indices = @transform_2, window_bounds = array<i64: 128, 128>}, {pipeline_mode = #tpu.pipeline_mode<synchronous>, transform_indices = @transform_3, window_bounds = array<i64: 128, 128>}, {pipeline_mode = #tpu.pipeline_mode<synchronous>, transform_indices = @transform_4, window_bounds = array<i64: 128, 512>}, {pipeline_mode = #tpu.pipeline_mode<synchronous>, transform_indices = @transform_5, window_bounds = array<i64: 1, 512>}, {pipeline_mode = #tpu.pipeline_mode<synchronous>, transform_indices = @transform_6, window_bounds = array<i64: 512, 128>}, {pipeline_mode = #tpu.pipeline_mode<synchronous>, transform_indices = @transform_7, window_bounds = array<i64: 1, 128>}, {transform_indices = @transform_8, window_bounds = array<i64: 128, 128>}]} {
    %c0 = arith.constant 0 : index
    %c0_0 = arith.constant 0 : index
    %0 = vector.load %arg1[%c0, %c0_0] : memref<128x128xf32, #tpu.memory_space<vmem>>, vector<128x128xf32>
    %c0_1 = arith.constant 0 : index
    %c0_2 = arith.constant 0 : index
    %1 = vector.load %arg2[%c0_1, %c0_2] : memref<1x128xf32, #tpu.memory_space<vmem>>, vector<1x128xf32>
    %2 = vector.broadcast %1 : vector<1x128xf32> to vector<128x128xf32>
    %3 = arith.mulf %0, %2 : vector<128x128xf32>
    %4 = arith.truncf %3 : vector<128x128xf32> to vector<128x128xbf16>
    %c0_3 = arith.constant 0 : index
    %c0_4 = arith.constant 0 : index
    %5 = vector.load %arg3[%c0_3, %c0_4] : memref<128x128xbf16, #tpu.memory_space<vmem>>, vector<128x128xbf16>
    %cst = arith.constant dense<0.000000e+00> : vector<128x128xf32>
    %6 = tpu.matmul %5, %4, %cst {dimension_numbers = #tpu.dot_dimension_numbers<[1], [0], [0], [1], [0, 0, 1, 1], [], []>} : vector<128x128xbf16>, vector<128x128xbf16>, vector<128x128xf32> -> vector<128x128xf32>
    %7 = arith.addf %0, %6 : vector<128x128xf32>
    %c0_5 = arith.constant 0 : index
    %c0_6 = arith.constant 0 : index
    %8 = vector.load %arg4[%c0_5, %c0_6] : memref<128x128xf32, #tpu.memory_space<vmem>>, vector<128x128xf32>
    %9 = arith.addf %7, %8 : vector<128x128xf32>
    %10 = arith.truncf %9 : vector<128x128xf32> to vector<128x128xbf16>
    %c0_7 = arith.constant 0 : index
    %c0_8 = arith.constant 0 : index
    %11 = vector.load %arg5[%c0_7, %c0_8] : memref<128x512xbf16, #tpu.memory_space<vmem>>, vector<128x512xbf16>
    %cst_9 = arith.constant dense<0.000000e+00> : vector<128x512xf32>
    %12 = tpu.matmul %10, %11, %cst_9 {dimension_numbers = #tpu.dot_dimension_numbers<[1], [0], [0], [1], [0, 0, 1, 1], [], []>} : vector<128x128xbf16>, vector<128x512xbf16>, vector<128x512xf32> -> vector<128x512xf32>
    %c0_10 = arith.constant 0 : index
    %c0_11 = arith.constant 0 : index
    %13 = vector.load %arg6[%c0_10, %c0_11] : memref<1x512xf32, #tpu.memory_space<vmem>>, vector<1x512xf32>
    %14 = vector.broadcast %13 : vector<1x512xf32> to vector<128x512xf32>
    %15 = arith.addf %12, %14 : vector<128x512xf32>
    %16 = arith.mulf %15, %15 : vector<128x512xf32>
    %17 = arith.mulf %15, %16 : vector<128x512xf32>
    %cst_12 = arith.constant 4.471500e-02 : f32
    %18 = vector.broadcast %cst_12 : f32 to vector<128x512xf32>
    %19 = arith.mulf %18, %17 : vector<128x512xf32>
    %20 = arith.addf %15, %19 : vector<128x512xf32>
    %cst_13 = arith.constant 0.797884583 : f32
    %21 = vector.broadcast %cst_13 : f32 to vector<128x512xf32>
    %22 = arith.mulf %21, %20 : vector<128x512xf32>
    %23 = math.tanh %22 : vector<128x512xf32>
    %cst_14 = arith.constant 1.000000e+00 : f32
    %24 = vector.broadcast %cst_14 : f32 to vector<128x512xf32>
    %25 = arith.addf %24, %23 : vector<128x512xf32>
    %cst_15 = arith.constant 5.000000e-01 : f32
    %26 = vector.broadcast %cst_15 : f32 to vector<128x512xf32>
    %27 = arith.mulf %26, %25 : vector<128x512xf32>
    %28 = arith.mulf %15, %27 : vector<128x512xf32>
    %29 = arith.truncf %28 : vector<128x512xf32> to vector<128x512xbf16>
    %c0_16 = arith.constant 0 : index
    %c0_17 = arith.constant 0 : index
    %30 = vector.load %arg7[%c0_16, %c0_17] : memref<512x128xbf16, #tpu.memory_space<vmem>>, vector<512x128xbf16>
    %cst_18 = arith.constant dense<0.000000e+00> : vector<128x128xf32>
    %31 = tpu.matmul %29, %30, %cst_18 {dimension_numbers = #tpu.dot_dimension_numbers<[1], [0], [0], [1], [0, 0, 1, 1], [], []>} : vector<128x512xbf16>, vector<512x128xbf16>, vector<128x128xf32> -> vector<128x128xf32>
    %32 = arith.addf %9, %31 : vector<128x128xf32>
    %c0_19 = arith.constant 0 : index
    %c0_20 = arith.constant 0 : index
    %33 = vector.load %arg8[%c0_19, %c0_20] : memref<1x128xf32, #tpu.memory_space<vmem>>, vector<1x128xf32>
    %34 = vector.broadcast %33 : vector<1x128xf32> to vector<128x128xf32>
    %35 = arith.addf %32, %34 : vector<128x128xf32>
    %c0_21 = arith.constant 0 : index
    %c0_22 = arith.constant 0 : index
    %36 = vector.load %arg9[%c0_21, %c0_22] : memref<128x128xf32, #tpu.memory_space<vmem>>, vector<128x128xf32>
    tpu.vector_store %arg9[%c0_21, %c0_22], %35 {strides = array<i32>} : memref<128x128xf32, #tpu.memory_space<vmem>>, vector<128x128xf32>,
    return
  }
  func.func @transform_0(%arg0: i32) -> (i32, i32) {
    %c0_i32 = arith.constant 0 : i32
    %c0_i32_0 = arith.constant 0 : i32
    return %arg0, %c0_i32 : i32, i32
  }
  func.func @transform_1(%arg0: i32) -> (i32, i32) {
    %c0_i32 = arith.constant 0 : i32
    %c0_i32_0 = arith.constant 0 : i32
    %c0_i32_1 = arith.constant 0 : i32
    return %c0_i32, %c0_i32_0 : i32, i32
  }
  func.func @transform_2(%arg0: i32) -> (i32, i32) {
    %c0_i32 = arith.constant 0 : i32
    %c0_i32_0 = arith.constant 0 : i32
    %c0_i32_1 = arith.constant 0 : i32
    return %c0_i32, %c0_i32_0 : i32, i32
  }
  func.func @transform_3(%arg0: i32) -> (i32, i32) {
    %c0_i32 = arith.constant 0 : i32
    %c0_i32_0 = arith.constant 0 : i32
    %c0_i32_1 = arith.constant 0 : i32
    return %c0_i32, %c0_i32_0 : i32, i32
  }
  func.func @transform_4(%arg0: i32) -> (i32, i32) {
    %c0_i32 = arith.constant 0 : i32
    %c0_i32_0 = arith.constant 0 : i32
    %c0_i32_1 = arith.constant 0 : i32
    return %c0_i32, %c0_i32_0 : i32, i32
  }
  func.func @transform_5(%arg0: i32) -> (i32, i32) {
    %c0_i32 = arith.constant 0 : i32
    %c0_i32_0 = arith.constant 0 : i32
    %c0_i32_1 = arith.constant 0 : i32
    return %c0_i32, %c0_i32_0 : i32, i32
  }
  func.func @transform_6(%arg0: i32) -> (i32, i32) {
    %c0_i32 = arith.constant 0 : i32
    %c0_i32_0 = arith.constant 0 : i32
    %c0_i32_1 = arith.constant 0 : i32
    return %c0_i32, %c0_i32_0 : i32, i32
  }
  func.func @transform_7(%arg0: i32) -> (i32, i32) {
    %c0_i32 = arith.constant 0 : i32
    %c0_i32_0 = arith.constant 0 : i32
    %c0_i32_1 = arith.constant 0 : i32
    return %c0_i32, %c0_i32_0 : i32, i32
  }
  func.func @transform_8(%arg0: i32) -> (i32, i32) {
    %c0_i32 = arith.constant 0 : i32
    %c0_i32_0 = arith.constant 0 : i32
    return %arg0, %c0_i32 : i32, i32
  }
}

</mosaic_0001>

<llo_original>
// kernel: tpu_custom_call.1
$region0: #{tpu_custom_call.1}
  #allocation0 [shape = 'u32[]', space=smem, size = 0x4, offset = 0x4, fixed_abs, tag = 'smem constant byte address 0x4 - core index']
  #allocation1 [shape = 'u32[144,128]{1,0:T(1,128)}', space=vmem, size = 0x12000, scoped, tag = 'internal scratch']
  %s0 = inlined_call_operand.hbm [shape: f32[512,128], index: 0, kind: input, shape index: {}]
  %s1 = inlined_call_operand.vmem [shape: f32[1,128], index: 1, kind: input, shape index: {}]
  %s2 = inlined_call_operand.hbm [shape: bf16[128,128], index: 2, kind: input, shape index: {}]
  %s3 = inlined_call_operand.hbm [shape: f32[128,128], index: 3, kind: input, shape index: {}]
  %s4 = inlined_call_operand.hbm [shape: bf16[128,512], index: 4, kind: input, shape index: {}]
  %s5 = inlined_call_operand.vmem [shape: f32[1,512], index: 5, kind: input, shape index: {}]
  %s6 = inlined_call_operand.hbm [shape: bf16[512,128], index: 6, kind: input, shape index: {}]
  %s7 = inlined_call_operand.vmem [shape: f32[1,128], index: 7, kind: input, shape index: {}]
  %s8 = inlined_call_operand.hbm [shape: f32[512,128], index: 8, kind: output, shape index: {}]
  %s9 = sld [smem:[#allocation0]]
  $region85: #{tpu_custom_call.1} parent=0
    _
  %s11 = ssub.s32 1, %s9
  %s12 = scalar_select 0, %s11, %s9
  $region1: #{tpu_custom_call.1} parent=0
    #allocation2 [shape = 'u8[131072]{0}', space=vmem, size = 0x20000, scoped, tag = 'input window, operand 0']
    #allocation3 [shape = 's32[2]{0}', space=sflag, size = 0x8, scoped, tag = 'scoped memory for tpu_custom_call.1']
    #allocation4 [shape = 's32[2]{0}', space=sflag, size = 0x8, scoped, tag = 'scoped memory for tpu_custom_call.1']
    #allocation5 [shape = 'u8[32768]{0}', space=vmem, size = 0x8000, scoped, tag = 'input window, operand 2, single buffered']
    #allocation6 [shape = 's32[1]{0}', space=sflag, size = 0x4, scoped, tag = 'scoped memory for tpu_custom_call.1']
    #allocation7 [shape = 'u8[65536]{0}', space=vmem, size = 0x10000, scoped, tag = 'input window, operand 3, single buffered']
    #allocation8 [shape = 'u8[131072]{0}', space=vmem, size = 0x20000, scoped, tag = 'input window, operand 4, single buffered']
    #allocation9 [shape = 's32[1]{0}', space=sflag, size = 0x4, scoped, tag = 'scoped memory for tpu_custom_call.1']
    #allocation10 [shape = 'u8[131072]{0}', space=vmem, size = 0x20000, scoped, tag = 'input window, operand 6, single buffered']
    #allocation11 [shape = 'u8[131072]{0}', space=vmem, size = 0x20000, scoped, tag = 'output window, operand 0']
    %13 = vsyncpa [#allocation3], 0
    %s14 = scalar_lea.sflag [#allocation3], 1
    %15 = vsyncpa %s14, 0
    %16 = vsyncpa [#allocation6], 0
    %17 = vsyncpa [#allocation9], 0
    %18 = vsyncpa [#allocation4], 0
    %s19 = scalar_lea.sflag [#allocation4], 1
    %20 = vsyncpa %s19, 0
    loop: start=0, step=1, limit=6
    $region2: #{tpu_custom_call.1} parent=1 // loop_pre_header
      _
    $region3: #{tpu_custom_call.1} parent=1 // loop_header
      %s22 = sphi 0, %s26
      %p23 = scmp.ge.s32.totalorder %s22, 6
      %s32 = sphi 0, %s34
      %s35 = sphi 0, %s32
      %s36 = sphi 0, %s35
      %s52 = sphi 0, %s36
      %s56 = sphi 0, %s56
      %s58 = sphi 0, %s56
      %s59 = sphi 0, %s58
      %s73 = sphi 0, %s59
      %s77 = sphi 0, %s77
      %s79 = sphi 0, %s77
      %s80 = sphi 0, %s79
      %s94 = sphi 0, %s80
      %s98 = sphi 0, %s98
      %s100 = sphi 0, %s98
      %s101 = sphi 0, %s100
      %s115 = sphi 0, %s101
      %s119 = sphi 0, %s119
      %s121 = sphi 0, %s119
      %s122 = sphi 0, %s121
      %s136 = sphi 0, %s122
      %s140 = sphi 0, %s140
      %s142 = sphi 0, %s140
      %s143 = sphi 0, %s142
      %s157 = sphi 0, %s143
      %s161 = sphi 0, %s161
      %s163 = sphi 0, %s161
      %s164 = sphi 0, %s163
      %s178 = sphi 0, %s164
      %s182 = sphi 0, %s182
      %s184 = sphi 0, %s182
      %s185 = sphi 0, %s184
      %s199 = sphi 0, %s185
      %s205 = sphi 0, %s207
      %s208 = sphi 0, %s205
      %s209 = sphi 0, %s208
      %s225 = sphi 0, %s209
    $region4: #{tpu_custom_call.1} parent=1 // loop_header_branch
      %25 = sbr.rel (%p23) target = $region8
    $region5: #{tpu_custom_call.1} parent=1 // loop_body
      %s27 = ssub.s32 %s22, 1
      %s28 = ssub.s32 %s22, 2
      %s29 = sadd.s32 %s22, 1
      %s30 = ssub.s32 %s22, %s29
      %p31 = scmp.eq.s32.totalorder %s30, 0
      %s33 = sadd.s32 %s32, 1
      %s34 = scalar_select %p31, %s32, %s33
      %p37 = pneg %p31
      %p38 = scmp.eq.s32.totalorder %s22, 3
      %p39 = por %p37, %p38
      %p40 = scmp.ne.s32.totalorder %s32, %s35
      %p41 = scmp.eq.s32.totalorder %s22, 0
      %p42 = por %p40, %p41
      %p43 = scmp.ne.s32.totalorder %s32, %s35
      %p44 = scmp.eq.s32.totalorder %s27, 3
      %p45 = por %p43, %p44
      %p46 = scmp.ne.s32.totalorder %s35, %s36
      %p47 = scmp.eq.s32.totalorder %s27, 0
      %p48 = por %p46, %p47
      %p49 = scmp.ne.s32.totalorder %s35, %s36
      %p50 = scmp.eq.s32.totalorder %s28, 3
      %p51 = por %p49, %p50
      %p53 = scmp.ne.s32.totalorder %s36, %s52
      %p54 = scmp.eq.s32.totalorder %s28, 0
      %p55 = por %p53, %p54
      %s57 = sadd.s32 %s56, 1
      %p60 = scmp.eq.s32.totalorder %s22, 3
      %p61 = scmp.ne.s32.totalorder %s56, %s58
      %p62 = scmp.eq.s32.totalorder %s22, 0
      %p63 = por %p61, %p62
      %p64 = scmp.ne.s32.totalorder %s56, %s58
      %p65 = scmp.eq.s32.totalorder %s27, 3
      %p66 = por %p64, %p65
      %p67 = scmp.ne.s32.totalorder %s58, %s59
      %p68 = scmp.eq.s32.totalorder %s27, 0
      %p69 = por %p67, %p68
      %p70 = scmp.ne.s32.totalorder %s58, %s59
      %p71 = scmp.eq.s32.totalorder %s28, 3
      %p72 = por %p70, %p71
      %p74 = scmp.ne.s32.totalorder %s59, %s73
      %p75 = scmp.eq.s32.totalorder %s28, 0
      %p76 = por %p74, %p75
      %s78 = sadd.s32 %s77, 1
      %p81 = scmp.eq.s32.totalorder %s22, 3
      %p82 = scmp.ne.s32.totalorder %s77, %s79
      %p83 = scmp.eq.s32.totalorder %s22, 0
      %p84 = por %p82, %p83
      %p85 = scmp.ne.s32.totalorder %s77, %s79
      %p86 = scmp.eq.s32.totalorder %s27, 3
      %p87 = por %p85, %p86
      %p88 = scmp.ne.s32.totalorder %s79, %s80
      %p89 = scmp.eq.s32.totalorder %s27, 0
      %p90 = por %p88, %p89
      %p91 = scmp.ne.s32.totalorder %s79, %s80
      %p92 = scmp.eq.s32.totalorder %s28, 3
      %p93 = por %p91, %p92
      %p95 = scmp.ne.s32.totalorder %s80, %s94
      %p96 = scmp.eq.s32.totalorder %s28, 0
      %p97 = por %p95, %p96
      %s99 = sadd.s32 %s98, 1
      %p102 = scmp.eq.s32.totalorder %s22, 3
      %p103 = scmp.ne.s32.totalorder %s98, %s100
      %p104 = scmp.eq.s32.totalorder %s22, 0
      %p105 = por %p103, %p104
      %p106 = scmp.ne.s32.totalorder %s98, %s100
      %p107 = scmp.eq.s32.totalorder %s27, 3
      %p108 = por %p106, %p107
      %p109 = scmp.ne.s32.totalorder %s100, %s101
      %p110 = scmp.eq.s32.totalorder %s27, 0
      %p111 = por %p109, %p110
      %p112 = scmp.ne.s32.totalorder %s100, %s101
      %p113 = scmp.eq.s32.totalorder %s28, 3
      %p114 = por %p112, %p113
      %p116 = scmp.ne.s32.totalorder %s101, %s115
      %p117 = scmp.eq.s32.totalorder %s28, 0
      %p118 = por %p116, %p117
      %s120 = sadd.s32 %s119, 1
      %p123 = scmp.eq.s32.totalorder %s22, 3
      %p124 = scmp.ne.s32.totalorder %s119, %s121
      %p125 = scmp.eq.s32.totalorder %s22, 0
      %p126 = por %p124, %p125
      %p127 = scmp.ne.s32.totalorder %s119, %s121
      %p128 = scmp.eq.s32.totalorder %s27, 3
      %p129 = por %p127, %p128
      %p130 = scmp.ne.s32.totalorder %s121, %s122
      %p131 = scmp.eq.s32.totalorder %s27, 0
      %p132 = por %p130, %p131
      %p133 = scmp.ne.s32.totalorder %s121, %s122
      %p134 = scmp.eq.s32.totalorder %s28, 3
      %p135 = por %p133, %p134
      %p137 = scmp.ne.s32.totalorder %s122, %s136
      %p138 = scmp.eq.s32.totalorder %s28, 0
      %p139 = por %p137, %p138
      %s141 = sadd.s32 %s140, 1
      %p144 = scmp.eq.s32.totalorder %s22, 3
      %p145 = scmp.ne.s32.totalorder %s140, %s142
      %p146 = scmp.eq.s32.totalorder %s22, 0
      %p147 = por %p145, %p146
      %p148 = scmp.ne.s32.totalorder %s140, %s142
      %p149 = scmp.eq.s32.totalorder %s27, 3
      %p150 = por %p148, %p149
      %p151 = scmp.ne.s32.totalorder %s142, %s143
      %p152 = scmp.eq.s32.totalorder %s27, 0
      %p153 = por %p151, %p152
      %p154 = scmp.ne.s32.totalorder %s142, %s143
      %p155 = scmp.eq.s32.totalorder %s28, 3
      %p156 = por %p154, %p155
      %p158 = scmp.ne.s32.totalorder %s143, %s157
      %p159 = scmp.eq.s32.totalorder %s28, 0
      %p160 = por %p158, %p159
      %s162 = sadd.s32 %s161, 1
      %p165 = scmp.eq.s32.totalorder %s22, 3
      %p166 = scmp.ne.s32.totalorder %s161, %s163
      %p167 = scmp.eq.s32.totalorder %s22, 0
      %p168 = por %p166, %p167
      %p169 = scmp.ne.s32.totalorder %s161, %s163
      %p170 = scmp.eq.s32.totalorder %s27, 3
      %p171 = por %p169, %p170
      %p172 = scmp.ne.s32.totalorder %s163, %s164
      %p173 = scmp.eq.s32.totalorder %s27, 0
      %p174 = por %p172, %p173
      %p175 = scmp.ne.s32.totalorder %s163, %s164
      %p176 = scmp.eq.s32.totalorder %s28, 3
      %p177 = por %p175, %p176
      %p179 = scmp.ne.s32.totalorder %s164, %s178
      %p180 = scmp.eq.s32.totalorder %s28, 0
      %p181 = por %p179, %p180
      %s183 = sadd.s32 %s182, 1
      %p186 = scmp.eq.s32.totalorder %s22, 3
      %p187 = scmp.ne.s32.totalorder %s182, %s184
      %p188 = scmp.eq.s32.totalorder %s22, 0
      %p189 = por %p187, %p188
      %p190 = scmp.ne.s32.totalorder %s182, %s184
      %p191 = scmp.eq.s32.totalorder %s27, 3
      %p192 = por %p190, %p191
      %p193 = scmp.ne.s32.totalorder %s184, %s185
      %p194 = scmp.eq.s32.totalorder %s27, 0
      %p195 = por %p193, %p194
      %p196 = scmp.ne.s32.totalorder %s184, %s185
      %p197 = scmp.eq.s32.totalorder %s28, 3
      %p198 = por %p196, %p197
      %p200 = scmp.ne.s32.totalorder %s185, %s199
      %p201 = scmp.eq.s32.totalorder %s28, 0
      %p202 = por %p200, %p201
      %s203 = ssub.s32 %s22, %s29
      %p204 = scmp.eq.s32.totalorder %s203, 0
      %s206 = sadd.s32 %s205, 1
      %s207 = scalar_select %p204, %s205, %s206
      %p210 = pneg %p204
      %p211 = scmp.eq.s32.totalorder %s22, 3
      %p212 = por %p210, %p211
      %p213 = scmp.ne.s32.totalorder %s205, %s208
      %p214 = scmp.eq.s32.totalorder %s22, 0
      %p215 = por %p213, %p214
      %p216 = scmp.ne.s32.totalorder %s205, %s208
      %p217 = scmp.eq.s32.totalorder %s27, 3
      %p218 = por %p216, %p217
      %p219 = scmp.ne.s32.totalorder %s208, %s209
      %p220 = scmp.eq.s32.totalorder %s27, 0
      %p221 = por %p219, %p220
      %p222 = scmp.ne.s32.totalorder %s208, %s209
      %p223 = scmp.eq.s32.totalorder %s28, 3
      %p224 = por %p222, %p223
      %p226 = scmp.ne.s32.totalorder %s209, %s225
      %p227 = scmp.eq.s32.totalorder %s28, 0
      %p228 = por %p226, %p227
      %p229 = scmp.le.s32.totalorder 1, %s22
      %p230 = scmp.lt.s32.totalorder %s22, 5
      %p231 = pnand %p229, %p230
      %p232 = pneg %p231
      // Predicated region
      $region9: #{tpu_custom_call.1} parent=5 // pred_check
        _
      $region10: #{tpu_custom_call.1} parent=5 // pred_check_branch
        %234 = sbr.rel (%p231) target = $region12
      $region11: #{tpu_custom_call.1} parent=5 // pred_region
        %s235 = ssub.s32 %s22, 1
        // Predicated region
        $region13: #{tpu_custom_call.1} parent=11 // pred_check
          %p236 = pneg %p69
        $region14: #{tpu_custom_call.1} parent=11 // pred_check_branch
          %238 = sbr.rel (%p236) target = $region16
        $region15: #{tpu_custom_call.1} parent=11 // pred_region
          _
        $region16: #{tpu_custom_call.1} parent=11 // pred_fallthru
          _
        // Predicated region
        $region17: #{tpu_custom_call.1} parent=11 // pred_check
          %p239 = pneg %p90
        $region18: #{tpu_custom_call.1} parent=11 // pred_check_branch
          %241 = sbr.rel (%p239) target = $region20
        $region19: #{tpu_custom_call.1} parent=11 // pred_region
          %s243 = ssub.s32 1024, 1024
          %244 = vsyncadd [#allocation6], %s243
          %s245 = sshll.u32 [#allocation5], 4
          %s246 = int_to_ptr.vmem [resolvable:$true] %s245
          %251 = dma.hbm_to_vmem [thread:$0]  %s2, 1024, %s246, [#allocation6], 64, 64, 4
        $region20: #{tpu_custom_call.1} parent=11 // pred_fallthru
          _
        // Predicated region
        $region21: #{tpu_custom_call.1} parent=11 // pred_check
          %p252 = pneg %p111
        $region22: #{tpu_custom_call.1} parent=11 // pred_check_branch
          %254 = sbr.rel (%p252) target = $region24
        $region23: #{tpu_custom_call.1} parent=11 // pred_region
          %s256 = ssub.s32 2048, 2048
          %257 = vsyncadd [#allocation6], %s256
          %s258 = sshll.u32 [#allocation7], 4
          %s259 = int_to_ptr.vmem [resolvable:$true] %s258
          %264 = dma.hbm_to_vmem [thread:$0]  %s3, 2048, %s259, [#allocation6], 128, 128, 8
        $region24: #{tpu_custom_call.1} parent=11 // pred_fallthru
          _
        // Predicated region
        $region25: #{tpu_custom_call.1} parent=11 // pred_check
          %p265 = pneg %p132
        $region26: #{tpu_custom_call.1} parent=11 // pred_check_branch
          %267 = sbr.rel (%p265) target = $region28
        $region27: #{tpu_custom_call.1} parent=11 // pred_region
          %s269 = ssub.s32 4096, 4096
          %270 = vsyncadd [#allocation9], %s269
          %s271 = sshll.u32 [#allocation8], 4
          %s272 = int_to_ptr.vmem [resolvable:$true] %s271
          %277 = dma.hbm_to_vmem [thread:$0]  %s4, 4096, %s272, [#allocation9], 256, 256, 16
        $region28: #{tpu_custom_call.1} parent=11 // pred_fallthru
          _
        // Predicated region
        $region29: #{tpu_custom_call.1} parent=11 // pred_check
          %p278 = pneg %p153
        $region30: #{tpu_custom_call.1} parent=11 // pred_check_branch
          %280 = sbr.rel (%p278) target = $region32
        $region31: #{tpu_custom_call.1} parent=11 // pred_region
          _
        $region32: #{tpu_custom_call.1} parent=11 // pred_fallthru
          _
        // Predicated region
        $region33: #{tpu_custom_call.1} parent=11 // pred_check
          %p281 = pneg %p174
        $region34: #{tpu_custom_call.1} parent=11 // pred_check_branch
          %283 = sbr.rel (%p281) target = $region36
        $region35: #{tpu_custom_call.1} parent=11 // pred_region
          %s285 = ssub.s32 4096, 4096
          %286 = vsyncadd [#allocation9], %s285
          %s287 = sshll.u32 [#allocation10], 4
          %s288 = int_to_ptr.vmem [resolvable:$true] %s287
          %293 = dma.hbm_to_vmem [thread:$0]  %s6, 4096, %s288, [#allocation9], 64, 64, 4
        $region36: #{tpu_custom_call.1} parent=11 // pred_fallthru
          _
        // Predicated region
        $region37: #{tpu_custom_call.1} parent=11 // pred_check
          %p294 = pneg %p195
        $region38: #{tpu_custom_call.1} parent=11 // pred_check_branch
          %296 = sbr.rel (%p294) target = $region40
        $region39: #{tpu_custom_call.1} parent=11 // pred_region
          _
        $region40: #{tpu_custom_call.1} parent=11 // pred_fallthru
          _
      $region12: #{tpu_custom_call.1} parent=5 // pred_fallthru
        _
      %p297 = scmp.lt.s32.totalorder %s22, 4
      // Predicated region
      $region41: #{tpu_custom_call.1} parent=5 // pred_check
        %p298 = pneg %p297
      $region42: #{tpu_custom_call.1} parent=5 // pred_check_branch
        %300 = sbr.rel (%p298) target = $region44
      $region43: #{tpu_custom_call.1} parent=5 // pred_region
        // Predicated region
        $region45: #{tpu_custom_call.1} parent=43 // pred_check
          %p301 = pneg %p42
        $region46: #{tpu_custom_call.1} parent=43 // pred_check_branch
          %303 = sbr.rel (%p301) target = $region48
        $region47: #{tpu_custom_call.1} parent=43 // pred_region
          %s304 = sand.u32 %s32, 1
          %s305 = scalar_lea.sflag [#allocation3], %s304
          %s306 = sand.u32 %s32, 1
          %s307 = smul.addr %s306, 128
          %s308 = scalar_lea.vmem [#allocation2], %s307
          %s309 = smul.u32 16, %s22
          %s311 = ssub.s32 2048, 2048
          %312 = vsyncadd %s305, %s311
          %s313 = smul.addr %s309, 128
          %s314 = scalar_lea.hbm %s0, %s313
          %s315 = sshll.u32 %s308, 4
          %s316 = int_to_ptr.vmem [resolvable:$true] %s315
          %321 = dma.hbm_to_vmem [thread:$0]  %s314, 2048, %s316, %s305, 128, 128, 8
        $region48: #{tpu_custom_call.1} parent=43 // pred_fallthru
          _
      $region44: #{tpu_custom_call.1} parent=5 // pred_fallthru
        _
      %p322 = scmp.le.s32.totalorder 1, %s22
      %p323 = scmp.lt.s32.totalorder %s22, 5
      %p324 = pnand %p322, %p323
      %p325 = pneg %p324
      // Predicated region
      $region49: #{tpu_custom_call.1} parent=5 // pred_check
        _
      $region50: #{tpu_custom_call.1} parent=5 // pred_check_branch
        %327 = sbr.rel (%p324) target = $region52
      $region51: #{tpu_custom_call.1} parent=5 // pred_region
        %s328 = ssub.s32 %s22, 1
        %s329 = sand.u32 %s35, 1
        %s330 = scalar_lea.sflag [#allocation3], %s329
        %s331 = sand.u32 %s35, 1
        %s332 = smul.addr %s331, 128
        %s333 = scalar_lea.vmem [#allocation2], %s332
        // Predicated region
        $region53: #{tpu_custom_call.1} parent=51 // pred_check
          %p334 = pneg %p48
        $region54: #{tpu_custom_call.1} parent=51 // pred_check_branch
          %336 = sbr.rel (%p334) target = $region56
        $region55: #{tpu_custom_call.1} parent=51 // pred_region
          %337 = dma.done %s330, 2048
        $region56: #{tpu_custom_call.1} parent=51 // pred_fallthru
          _
        // Predicated region
        $region57: #{tpu_custom_call.1} parent=51 // pred_check
          %p338 = pneg %p90
        $region58: #{tpu_custom_call.1} parent=51 // pred_check_branch
          %340 = sbr.rel (%p338) target = $region60
        $region59: #{tpu_custom_call.1} parent=51 // pred_region
          %341 = dma.done [#allocation6], 1024
        $region60: #{tpu_custom_call.1} parent=51 // pred_fallthru
          _
        // Predicated region
        $region61: #{tpu_custom_call.1} parent=51 // pred_check
          %p342 = pneg %p111
        $region62: #{tpu_custom_call.1} parent=51 // pred_check_branch
          %344 = sbr.rel (%p342) target = $region64
        $region63: #{tpu_custom_call.1} parent=51 // pred_region
          %345 = dma.done [#allocation6], 2048
        $region64: #{tpu_custom_call.1} parent=51 // pred_fallthru
          _
        // Predicated region
        $region65: #{tpu_custom_call.1} parent=51 // pred_check
          %p346 = pneg %p132
        $region66: #{tpu_custom_call.1} parent=51 // pred_check_branch
          %348 = sbr.rel (%p346) target = $region68
        $region67: #{tpu_custom_call.1} parent=51 // pred_region
          %349 = dma.done [#allocation9], 4096
        $region68: #{tpu_custom_call.1} parent=51 // pred_fallthru
          _
        // Predicated region
        $region69: #{tpu_custom_call.1} parent=51 // pred_check
          %p350 = pneg %p174
        $region70: #{tpu_custom_call.1} parent=51 // pred_check_branch
          %352 = sbr.rel (%p350) target = $region72
        $region71: #{tpu_custom_call.1} parent=51 // pred_region
          %353 = dma.done [#allocation9], 4096
        $region72: #{tpu_custom_call.1} parent=51 // pred_fallthru
          _
        %s354 = sand.u32 %s35, 1
        %s355 = scalar_lea.sflag [#allocation3], %s354
        %s356 = sand.u32 %s35, 1
        %s357 = smul.addr %s356, 128
        %s358 = scalar_lea.vmem [#allocation2], %s357
        %p359 = pneg %p48
        %p360 = pneg %p45
        %p361 = pneg %p69
        %p362 = pneg %p66
        %p363 = pneg %p90
        %p364 = pneg %p87
        %p365 = pneg %p111
        %p366 = pneg %p108
        %p367 = pneg %p132
        %p368 = pneg %p129
        %p369 = pneg %p153
        %p370 = pneg %p150
        %p371 = pneg %p174
        %p372 = pneg %p171
        %p373 = pneg %p195
        %p374 = pneg %p192
        %p375 = pneg %p221
        %p376 = pneg %p218
        %s377 = sand.u32 %s208, 1
        %s378 = scalar_lea.sflag [#allocation4], %s377
        %s379 = sand.u32 %s208, 1
        %s380 = smul.addr %s379, 128
        %s381 = scalar_lea.vmem [#allocation11], %s380
        %s382 = smul.u32 16, %s27
        %s383 = smul.u32 16, %s27
        %v385 = vld [vmem:[%s333] sm:$0xff]
        %v386 = vld [vmem:[%s333 + $0x8] sm:$0xff]
        %v387 = vld [vmem:[%s333 + $0x10] sm:$0xff]
        %v388 = vld [vmem:[%s333 + $0x18] sm:$0xff]
        %v389 = vld [vmem:[%s333 + $0x20] sm:$0xff]
        %v390 = vld [vmem:[%s333 + $0x28] sm:$0xff]
        %v391 = vld [vmem:[%s333 + $0x30] sm:$0xff]
        %v392 = vld [vmem:[%s333 + $0x38] sm:$0xff]
        %v393 = vld [vmem:[%s333 + $0x40] sm:$0xff]
        %v394 = vld [vmem:[%s333 + $0x48] sm:$0xff]
        %v395 = vld [vmem:[%s333 + $0x50] sm:$0xff]
        %v396 = vld [vmem:[%s333 + $0x58] sm:$0xff]
        %v397 = vld [vmem:[%s333 + $0x60] sm:$0xff]
        %v398 = vld [vmem:[%s333 + $0x68] sm:$0xff]
        %v399 = vld [vmem:[%s333 + $0x70] sm:$0xff]
        %v400 = vld [vmem:[%s333 + $0x78] sm:$0xff]
        %v401 = vld [vmem:[%s1] sm:$0x1]
        %v403 = vlaneseq
        %v404 = vshrl.u32 %v403, 7
        %v405 = vsub.s32 0, %v404
        %v406 = vrot.slane %v401, %v405
        %v408 = vmul.f32 %v385, %v406
        %v409 = vmul.f32 %v386, %v406
        %v410 = vmul.f32 %v387, %v406
        %v411 = vmul.f32 %v388, %v406
        %v412 = vmul.f32 %v389, %v406
        %v413 = vmul.f32 %v390, %v406
        %v414 = vmul.f32 %v391, %v406
        %v415 = vmul.f32 %v392, %v406
        %v416 = vmul.f32 %v393, %v406
        %v417 = vmul.f32 %v394, %v406
        %v418 = vmul.f32 %v395, %v406
        %v419 = vmul.f32 %v396, %v406
        %v420 = vmul.f32 %v397, %v406
        %v421 = vmul.f32 %v398, %v406
        %v422 = vmul.f32 %v399, %v406
        %v423 = vmul.f32 %v400, %v406
        %v424 = vpack.c.bf16 %v409, %v408
        %v425 = vpack.c.bf16 %v411, %v410
        %v426 = vpack.c.bf16 %v413, %v412
        %v427 = vpack.c.bf16 %v415, %v414
        %v428 = vpack.c.bf16 %v417, %v416
        %v429 = vpack.c.bf16 %v419, %v418
        %v430 = vpack.c.bf16 %v421, %v420
        %v431 = vpack.c.bf16 %v423, %v422
        %v432 = vld [vmem:[#allocation5] sm:$0xf]
        %v433 = vld [vmem:[#allocation5 + $0x4] sm:$0xf]
        %v434 = vld [vmem:[#allocation5 + $0x8] sm:$0xf]
        %v435 = vld [vmem:[#allocation5 + $0xc] sm:$0xf]
        %v436 = vld [vmem:[#allocation5 + $0x10] sm:$0xf]
        %v437 = vld [vmem:[#allocation5 + $0x14] sm:$0xf]
        %v438 = vld [vmem:[#allocation5 + $0x18] sm:$0xf]
        %v439 = vld [vmem:[#allocation5 + $0x1c] sm:$0xf]
        %v440 = vld [vmem:[#allocation5 + $0x20] sm:$0xf]
        %v441 = vld [vmem:[#allocation5 + $0x24] sm:$0xf]
        %v442 = vld [vmem:[#allocation5 + $0x28] sm:$0xf]
        %v443 = vld [vmem:[#allocation5 + $0x2c] sm:$0xf]
        %v444 = vld [vmem:[#allocation5 + $0x30] sm:$0xf]
        %v445 = vld [vmem:[#allocation5 + $0x34] sm:$0xf]
        %v446 = vld [vmem:[#allocation5 + $0x38] sm:$0xf]
        %v447 = vld [vmem:[#allocation5 + $0x3c] sm:$0xf]
        %v464 = vunpack.c.l.b16 %v432
        %v465 = vunpack.c.l.b16 %v433
        %v466 = vunpack.c.l.b16 %v434
        %v467 = vunpack.c.l.b16 %v435
        %v468 = vunpack.c.l.b16 %v436
        %v469 = vunpack.c.l.b16 %v437
        %v470 = vunpack.c.l.b16 %v438
        %v471 = vunpack.c.l.b16 %v439
        %v472 = vunpack.c.l.b16 %v440
        %v473 = vunpack.c.l.b16 %v441
        %v474 = vunpack.c.l.b16 %v442
        %v475 = vunpack.c.l.b16 %v443
        %v476 = vunpack.c.l.b16 %v444
        %v477 = vunpack.c.l.b16 %v445
        %v478 = vunpack.c.l.b16 %v446
        %v479 = vunpack.c.l.b16 %v447
        %v480 = vpack.c.b16 %v465, %v464
        %v481 = vpack.c.b16 %v467, %v466
        %v482 = vpack.c.b16 %v469, %v468
        %v483 = vpack.c.b16 %v471, %v470
        %v484 = vpack.c.b16 %v473, %v472
        %v485 = vpack.c.b16 %v475, %v474
        %v486 = vpack.c.b16 %v477, %v476
        %v487 = vpack.c.b16 %v479, %v478
        %496 = vmatprep.subr.bf16.mxu0 0
        %497 = vmatpush1.bf16.msra.mxu0 %v424
        %498 = vmatprep.subr.bf16.mxu0 0
        %499 = vmatpush1.bf16.msra.mxu0 %v425
        %500 = vmatprep.subr.bf16.mxu0 0
        %501 = vmatpush1.bf16.msra.mxu0 %v426
        %502 = vmatprep.subr.bf16.mxu0 0
        %503 = vmatpush1.bf16.msra.mxu0 %v427
        %504 = vmatprep.subr.bf16.mxu0 0
        %505 = vmatpush1.bf16.msra.mxu0 %v428
        %506 = vmatprep.subr.bf16.mxu0 0
        %507 = vmatpush1.bf16.msra.mxu0 %v429
        %508 = vmatprep.subr.bf16.mxu0 0
        %509 = vmatpush1.bf16.msra.mxu0 %v430
        %510 = vmatprep.subr.bf16.mxu0 0
        %511 = vmatpush1.bf16.msra.mxu0 %v431
        %512 = vmatprep.subr.bf16.mxu0 0
        %513 = vmatpush1.bf16.msra.mxu0 0
        %514 = vmatprep.subr.bf16.mxu0 0
        %515 = vmatpush1.bf16.msra.mxu0 0
        %516 = vmatprep.subr.bf16.mxu0 0
        %517 = vmatpush1.bf16.msra.mxu0 0
        %518 = vmatprep.subr.bf16.mxu0 0
        %519 = vmatpush1.bf16.msra.mxu0 0
        %520 = vmatprep.subr.bf16.mxu0 0
        %521 = vmatpush1.bf16.msra.mxu0 0
        %522 = vmatprep.subr.bf16.mxu0 0
        %523 = vmatpush1.bf16.msra.mxu0 0
        %524 = vmatprep.subr.bf16.mxu0 0
        %525 = vmatpush1.bf16.msra.mxu0 0
        %526 = vmatprep.subr.bf16.mxu0 0
        %527 = vmatpush1.bf16.msra.mxu0 0
        %528 = vmatprep.mubr.bf16.mxu0 0
        %529 = vmatmul.mubr.bf16.gmra.mrb[0].mxu0 %v480
        %v530 = vpop.f32.mrb[0].mxu0
        %v531 = vadd.f32 0.0, %v530
        %v532 = vpop.f32.mrb[0].mxu0
        %v533 = vpop.f32.mrb[0].mxu0
        %v534 = vadd.f32 0.0, %v533
        %v535 = vpop.f32.mrb[0].mxu0
        %536 = vmatprep.mubr.bf16.mxu0 0
        %537 = vmatmul.mubr.bf16.gmra.mrb[0].mxu0 %v481
        %v538 = vpop.f32.mrb[0].mxu0
        %v539 = vadd.f32 0.0, %v538
        %v540 = vpop.f32.mrb[0].mxu0
        %v541 = vpop.f32.mrb[0].mxu0
        %v542 = vadd.f32 0.0, %v541
        %v543 = vpop.f32.mrb[0].mxu0
        %544 = vmatprep.mubr.bf16.mxu0 0
        %545 = vmatmul.mubr.bf16.gmra.mrb[0].mxu0 %v482
        %v546 = vpop.f32.mrb[0].mxu0
        %v547 = vadd.f32 0.0, %v546
        %v548 = vpop.f32.mrb[0].mxu0
        %v549 = vpop.f32.mrb[0].mxu0
        %v550 = vadd.f32 0.0, %v549
        %v551 = vpop.f32.mrb[0].mxu0
        %552 = vmatprep.mubr.bf16.mxu0 0
        %553 = vmatmul.mubr.bf16.gmra.mrb[0].mxu0 %v483
        %v554 = vpop.f32.mrb[0].mxu0
        %v555 = vadd.f32 0.0, %v554
        %v556 = vpop.f32.mrb[0].mxu0
        %v557 = vpop.f32.mrb[0].mxu0
        %v558 = vadd.f32 0.0, %v557
        %v559 = vpop.f32.mrb[0].mxu0
        %560 = vmatprep.mubr.bf16.mxu0 0
        %561 = vmatmul.mubr.bf16.gmra.mrb[0].mxu0 %v484
        %v562 = vpop.f32.mrb[0].mxu0
        %v563 = vadd.f32 0.0, %v562
        %v564 = vpop.f32.mrb[0].mxu0
        %v565 = vpop.f32.mrb[0].mxu0
        %v566 = vadd.f32 0.0, %v565
        %v567 = vpop.f32.mrb[0].mxu0
        %568 = vmatprep.mubr.bf16.mxu0 0
        %569 = vmatmul.mubr.bf16.gmra.mrb[0].mxu0 %v485
        %v570 = vpop.f32.mrb[0].mxu0
        %v571 = vadd.f32 0.0, %v570
        %v572 = vpop.f32.mrb[0].mxu0
        %v573 = vpop.f32.mrb[0].mxu0
        %v574 = vadd.f32 0.0, %v573
        %v575 = vpop.f32.mrb[0].mxu0
        %576 = vmatprep.mubr.bf16.mxu0 0
        %577 = vmatmul.mubr.bf16.gmra.mrb[0].mxu0 %v486
        %v578 = vpop.f32.mrb[0].mxu0
        %v579 = vadd.f32 0.0, %v578
        %v580 = vpop.f32.mrb[0].mxu0
        %v581 = vpop.f32.mrb[0].mxu0
        %v582 = vadd.f32 0.0, %v581
        %v583 = vpop.f32.mrb[0].mxu0
        %584 = vmatprep.mubr.bf16.mxu0 0
        %585 = vmatmul.mubr.bf16.gmra.mrb[0].mxu0 %v487
        %v586 = vpop.f32.mrb[0].mxu0
        %v587 = vadd.f32 0.0, %v586
        %v588 = vpop.f32.mrb[0].mxu0
        %v589 = vpop.f32.mrb[0].mxu0
        %v590 = vadd.f32 0.0, %v589
        %v591 = vpop.f32.mrb[0].mxu0
        %592 = vdwg.mxu0
        %v593 = vadd.f32 %v385, %v531
        %v594 = vadd.f32 %v386, %v534
        %v595 = vadd.f32 %v387, %v539
        %v596 = vadd.f32 %v388, %v542
        %v597 = vadd.f32 %v389, %v547
        %v598 = vadd.f32 %v390, %v550
        %v599 = vadd.f32 %v391, %v555
        %v600 = vadd.f32 %v392, %v558
        %v601 = vadd.f32 %v393, %v563
        %v602 = vadd.f32 %v394, %v566
        %v603 = vadd.f32 %v395, %v571
        %v604 = vadd.f32 %v396, %v574
        %v605 = vadd.f32 %v397, %v579
        %v606 = vadd.f32 %v398, %v582
        %v607 = vadd.f32 %v399, %v587
        %v608 = vadd.f32 %v400, %v590
        %v609 = vld [vmem:[#allocation7] sm:$0xff]
        %v610 = vld [vmem:[#allocation7 + $0x8] sm:$0xff]
        %v611 = vld [vmem:[#allocation7 + $0x10] sm:$0xff]
        %v612 = vld [vmem:[#allocation7 + $0x18] sm:$0xff]
        %v613 = vld [vmem:[#allocation7 + $0x20] sm:$0xff]
        %v614 = vld [vmem:[#allocation7 + $0x28] sm:$0xff]
        %v615 = vld [vmem:[#allocation7 + $0x30] sm:$0xff]
        %v616 = vld [vmem:[#allocation7 + $0x38] sm:$0xff]
        %v617 = vld [vmem:[#allocation7 + $0x40] sm:$0xff]
        %v618 = vld [vmem:[#allocation7 + $0x48] sm:$0xff]
        %v619 = vld [vmem:[#allocation7 + $0x50] sm:$0xff]
        %v620 = vld [vmem:[#allocation7 + $0x58] sm:$0xff]
        %v621 = vld [vmem:[#allocation7 + $0x60] sm:$0xff]
        %v622 = vld [vmem:[#allocation7 + $0x68] sm:$0xff]
        %v623 = vld [vmem:[#allocation7 + $0x70] sm:$0xff]
        %v624 = vld [vmem:[#allocation7 + $0x78] sm:$0xff]
        %v625 = vadd.f32 %v593, %v609
        %v626 = vadd.f32 %v594, %v610
        %v627 = vadd.f32 %v595, %v611
        %v628 = vadd.f32 %v596, %v612
        %v629 = vadd.f32 %v597, %v613
        %v630 = vadd.f32 %v598, %v614
        %v631 = vadd.f32 %v599, %v615
        %v632 = vadd.f32 %v600, %v616
        %v633 = vadd.f32 %v601, %v617
        %v634 = vadd.f32 %v602, %v618
        %v635 = vadd.f32 %v603, %v619
        %v636 = vadd.f32 %v604, %v620
        %v637 = vadd.f32 %v605, %v621
        %v638 = vadd.f32 %v606, %v622
        %v639 = vadd.f32 %v607, %v623
        %v640 = vadd.f32 %v608, %v624
        %v641 = vpack.c.bf16 %v626, %v625
        %v642 = vpack.c.bf16 %v628, %v627
        %v643 = vpack.c.bf16 %v630, %v629
        %v644 = vpack.c.bf16 %v632, %v631
        %v645 = vpack.c.bf16 %v634, %v633
        %v646 = vpack.c.bf16 %v636, %v635
        %v647 = vpack.c.bf16 %v638, %v637
        %v648 = vpack.c.bf16 %v640, %v639
        %v649 = vld [vmem:[#allocation8] sm:$0xff]
        %v650 = vld [vmem:[#allocation8 + $0x8] sm:$0xff]
        %v651 = vld [vmem:[#allocation8 + $0x10] sm:$0xff]
        %v652 = vld [vmem:[#allocation8 + $0x18] sm:$0xff]
        %v653 = vld [vmem:[#allocation8 + $0x20] sm:$0xff]
        %v654 = vld [vmem:[#allocation8 + $0x28] sm:$0xff]
        %v655 = vld [vmem:[#allocation8 + $0x30] sm:$0xff]
        %v656 = vld [vmem:[#allocation8 + $0x38] sm:$0xff]
        %v657 = vld [vmem:[#allocation8 + $0x40] sm:$0xff]
        %v658 = vld [vmem:[#allocation8 + $0x48] sm:$0xff]
        %v659 = vld [vmem:[#allocation8 + $0x50] sm:$0xff]
        %v660 = vld [vmem:[#allocation8 + $0x58] sm:$0xff]
        %v661 = vld [vmem:[#allocation8 + $0x60] sm:$0xff]
        %v662 = vld [vmem:[#allocation8 + $0x68] sm:$0xff]
        %v663 = vld [vmem:[#allocation8 + $0x70] sm:$0xff]
        %v664 = vld [vmem:[#allocation8 + $0x78] sm:$0xff]
        %v665 = vld [vmem:[#allocation8 + $0x80] sm:$0xff]
        %v666 = vld [vmem:[#allocation8 + $0x88] sm:$0xff]
        %v667 = vld [vmem:[#allocation8 + $0x90] sm:$0xff]
        %v668 = vld [vmem:[#allocation8 + $0x98] sm:$0xff]
        %v669 = vld [vmem:[#allocation8 + $0xa0] sm:$0xff]
        %v670 = vld [vmem:[#allocation8 + $0xa8] sm:$0xff]
        %v671 = vld [vmem:[#allocation8 + $0xb0] sm:$0xff]
        %v672 = vld [vmem:[#allocation8 + $0xb8] sm:$0xff]
        %v673 = vld [vmem:[#allocation8 + $0xc0] sm:$0xff]
        %v674 = vld [vmem:[#allocation8 + $0xc8] sm:$0xff]
        %v675 = vld [vmem:[#allocation8 + $0xd0] sm:$0xff]
        %v676 = vld [vmem:[#allocation8 + $0xd8] sm:$0xff]
        %v677 = vld [vmem:[#allocation8 + $0xe0] sm:$0xff]
        %v678 = vld [vmem:[#allocation8 + $0xe8] sm:$0xff]
        %v679 = vld [vmem:[#allocation8 + $0xf0] sm:$0xff]
        %v680 = vld [vmem:[#allocation8 + $0xf8] sm:$0xff]
        %v681 = vld [vmem:[%s5] sm:$0xf]
        %v683 = vlaneseq
        %v684 = vshrl.u32 %v683, 7
        %v685 = vsub.s32 0, %v684
        %v686 = vrot.slane %v681, %v685
        %v687 = vlaneseq
        %v688 = vshrl.u32 %v687, 7
        %v689 = vsub.s32 1, %v688
        %v690 = vrot.slane %v681, %v689
        %v691 = vlaneseq
        %v692 = vshrl.u32 %v691, 7
        %v693 = vsub.s32 2, %v692
        %v694 = vrot.slane %v681, %v693
        %v695 = vlaneseq
        %v696 = vshrl.u32 %v695, 7
        %v697 = vsub.s32 3, %v696
        %v698 = vrot.slane %v681, %v697
        %v735 = vunpack.c.l.b16 %v649
        %v736 = vunpack.c.h.b16 %v649
        %v737 = vunpack.c.l.b16 %v650
        %v738 = vunpack.c.h.b16 %v650
        %v739 = vunpack.c.l.b16 %v651
        %v740 = vunpack.c.h.b16 %v651
        %v741 = vunpack.c.l.b16 %v652
        %v742 = vunpack.c.h.b16 %v652
        %v743 = vunpack.c.l.b16 %v653
        %v744 = vunpack.c.h.b16 %v653
        %v745 = vunpack.c.l.b16 %v654
        %v746 = vunpack.c.h.b16 %v654
        %v747 = vunpack.c.l.b16 %v655
        %v748 = vunpack.c.h.b16 %v655
        %v749 = vunpack.c.l.b16 %v656
        %v750 = vunpack.c.h.b16 %v656
        %v751 = vunpack.c.l.b16 %v657
        %v752 = vunpack.c.h.b16 %v657
        %v753 = vunpack.c.l.b16 %v658
        %v754 = vunpack.c.h.b16 %v658
        %v755 = vunpack.c.l.b16 %v659
        %v756 = vunpack.c.h.b16 %v659
        %v757 = vunpack.c.l.b16 %v660
        %v758 = vunpack.c.h.b16 %v660
        %v759 = vunpack.c.l.b16 %v661
        %v760 = vunpack.c.h.b16 %v661
        %v761 = vunpack.c.l.b16 %v662
        %v762 = vunpack.c.h.b16 %v662
        %v763 = vunpack.c.l.b16 %v663
        %v764 = vunpack.c.h.b16 %v663
        %v765 = vunpack.c.l.b16 %v664
        %v766 = vunpack.c.h.b16 %v664
        %v767 = vunpack.c.l.b16 %v665
        %v768 = vunpack.c.h.b16 %v665
        %v769 = vunpack.c.l.b16 %v666
        %v770 = vunpack.c.h.b16 %v666
        %v771 = vunpack.c.l.b16 %v667
        %v772 = vunpack.c.h.b16 %v667
        %v773 = vunpack.c.l.b16 %v668
        %v774 = vunpack.c.h.b16 %v668
        %v775 = vunpack.c.l.b16 %v669
        %v776 = vunpack.c.h.b16 %v669
        %v777 = vunpack.c.l.b16 %v670
        %v778 = vunpack.c.h.b16 %v670
        %v779 = vunpack.c.l.b16 %v671
        %v780 = vunpack.c.h.b16 %v671
        %v781 = vunpack.c.l.b16 %v672
        %v782 = vunpack.c.h.b16 %v672
        %v783 = vunpack.c.l.b16 %v673
        %v784 = vunpack.c.h.b16 %v673
        %v785 = vunpack.c.l.b16 %v674
        %v786 = vunpack.c.h.b16 %v674
        %v787 = vunpack.c.l.b16 %v675
        %v788 = vunpack.c.h.b16 %v675
        %v789 = vunpack.c.l.b16 %v676
        %v790 = vunpack.c.h.b16 %v676
        %v791 = vunpack.c.l.b16 %v677
        %v792 = vunpack.c.h.b16 %v677
        %v793 = vunpack.c.l.b16 %v678
        %v794 = vunpack.c.h.b16 %v678
        %v795 = vunpack.c.l.b16 %v679
        %v796 = vunpack.c.h.b16 %v679
        %v797 = vunpack.c.l.b16 %v680
        %v798 = vunpack.c.h.b16 %v680
        %v799 = vpack.c.b16 %v739, %v735
        %v800 = vpack.c.b16 %v740, %v736
        %v801 = vpack.c.b16 %v741, %v737
        %v802 = vpack.c.b16 %v742, %v738
        %v803 = vpack.c.b16 %v747, %v743
        %v804 = vpack.c.b16 %v748, %v744
        %v805 = vpack.c.b16 %v749, %v745
        %v806 = vpack.c.b16 %v750, %v746
        %v807 = vpack.c.b16 %v755, %v751
        %v808 = vpack.c.b16 %v756, %v752
        %v809 = vpack.c.b16 %v757, %v753
        %v810 = vpack.c.b16 %v758, %v754
        %v811 = vpack.c.b16 %v763, %v759
        %v812 = vpack.c.b16 %v764, %v760
        %v813 = vpack.c.b16 %v765, %v761
        %v814 = vpack.c.b16 %v766, %v762
        %v815 = vpack.c.b16 %v771, %v767
        %v816 = vpack.c.b16 %v772, %v768
        %v817 = vpack.c.b16 %v773, %v769
        %v818 = vpack.c.b16 %v774, %v770
        %v819 = vpack.c.b16 %v779, %v775
        %v820 = vpack.c.b16 %v780, %v776
        %v821 = vpack.c.b16 %v781, %v777
        %v822 = vpack.c.b16 %v782, %v778
        %v823 = vpack.c.b16 %v787, %v783
        %v824 = vpack.c.b16 %v788, %v784
        %v825 = vpack.c.b16 %v789, %v785
        %v826 = vpack.c.b16 %v790, %v786
        %v827 = vpack.c.b16 %v795, %v791
        %v828 = vpack.c.b16 %v796, %v792
        %v829 = vpack.c.b16 %v797, %v793
        %v830 = vpack.c.b16 %v798, %v794
        %863 = vmatprep.subr.bf16.mxu0 %v800
        %864 = vmatpush1.bf16.msra.mxu0 %v799
        %865 = vmatprep.subr.bf16.mxu0 %v804
        %866 = vmatpush1.bf16.msra.mxu0 %v803
        %867 = vmatprep.subr.bf16.mxu0 %v808
        %868 = vmatpush1.bf16.msra.mxu0 %v807
        %869 = vmatprep.subr.bf16.mxu0 %v812
        %870 = vmatpush1.bf16.msra.mxu0 %v811
        %871 = vmatprep.subr.bf16.mxu0 %v816
        %872 = vmatpush1.bf16.msra.mxu0 %v815
        %873 = vmatprep.subr.bf16.mxu0 %v820
        %874 = vmatpush1.bf16.msra.mxu0 %v819
        %875 = vmatprep.subr.bf16.mxu0 %v824
        %876 = vmatpush1.bf16.msra.mxu0 %v823
        %877 = vmatprep.subr.bf16.mxu0 %v828
        %878 = vmatpush1.bf16.msra.mxu0 %v827
        %879 = vmatprep.subr.bf16.mxu0 0
        %880 = vmatpush1.bf16.msra.mxu0 0
        %881 = vmatprep.subr.bf16.mxu0 0
        %882 = vmatpush1.bf16.msra.mxu0 0
        %883 = vmatprep.subr.bf16.mxu0 0
        %884 = vmatpush1.bf16.msra.mxu0 0
        %885 = vmatprep.subr.bf16.mxu0 0
        %886 = vmatpush1.bf16.msra.mxu0 0
        %887 = vmatprep.subr.bf16.mxu0 0
        %888 = vmatpush1.bf16.msra.mxu0 0
        %889 = vmatprep.subr.bf16.mxu0 0
        %890 = vmatpush1.bf16.msra.mxu0 0
        %891 = vmatprep.subr.bf16.mxu0 0
        %892 = vmatpush1.bf16.msra.mxu0 0
        %893 = vmatprep.subr.bf16.mxu0 0
        %894 = vmatpush1.bf16.msra.mxu0 0
        %895 = vmatprep.mubr.bf16.mxu0 0
        %896 = vmatmul.mubr.bf16.gmra.mrb[0].mxu0 %v641
        %v897 = vpop.f32.mrb[0].mxu0
        %v898 = vadd.f32 %v686, %v897
        %v899 = vpop.f32.mrb[0].mxu0
        %v900 = vadd.f32 %v690, %v899
        %v901 = vpop.f32.mrb[0].mxu0
        %v902 = vadd.f32 %v686, %v901
        %v903 = vpop.f32.mrb[0].mxu0
        %v904 = vadd.f32 %v690, %v903
        %905 = vmatprep.mubr.bf16.mxu0 0
        %906 = vmatmul.mubr.bf16.gmra.mrb[0].mxu0 %v642
        %v907 = vpop.f32.mrb[0].mxu0
        %v908 = vadd.f32 %v686, %v907
        %v909 = vpop.f32.mrb[0].mxu0
        %v910 = vadd.f32 %v690, %v909
        %v911 = vpop.f32.mrb[0].mxu0
        %v912 = vadd.f32 %v686, %v911
        %v913 = vpop.f32.mrb[0].mxu0
        %v914 = vadd.f32 %v690, %v913
        %915 = vmatprep.mubr.bf16.mxu0 0
        %916 = vmatmul.mubr.bf16.gmra.mrb[0].mxu0 %v643
        %v917 = vpop.f32.mrb[0].mxu0
        %v918 = vadd.f32 %v686, %v917
        %v919 = vpop.f32.mrb[0].mxu0
        %v920 = vadd.f32 %v690, %v919
        %v921 = vpop.f32.mrb[0].mxu0
        %v922 = vadd.f32 %v686, %v921
        %v923 = vpop.f32.mrb[0].mxu0
        %v924 = vadd.f32 %v690, %v923
        %925 = vmatprep.mubr.bf16.mxu0 0
        %926 = vmatmul.mubr.bf16.gmra.mrb[0].mxu0 %v644
        %v927 = vpop.f32.mrb[0].mxu0
        %v928 = vadd.f32 %v686, %v927
        %v929 = vpop.f32.mrb[0].mxu0
        %v930 = vadd.f32 %v690, %v929
        %v931 = vpop.f32.mrb[0].mxu0
        %v932 = vadd.f32 %v686, %v931
        %v933 = vpop.f32.mrb[0].mxu0
        %v934 = vadd.f32 %v690, %v933
        %935 = vmatprep.mubr.bf16.mxu0 0
        %936 = vmatmul.mubr.bf16.gmra.mrb[0].mxu0 %v645
        %v937 = vpop.f32.mrb[0].mxu0
        %v938 = vadd.f32 %v686, %v937
        %v939 = vpop.f32.mrb[0].mxu0
        %v940 = vadd.f32 %v690, %v939
        %v941 = vpop.f32.mrb[0].mxu0
        %v942 = vadd.f32 %v686, %v941
        %v943 = vpop.f32.mrb[0].mxu0
        %v944 = vadd.f32 %v690, %v943
        %945 = vmatprep.mubr.bf16.mxu0 0
        %946 = vmatmul.mubr.bf16.gmra.mrb[0].mxu0 %v646
        %v947 = vpop.f32.mrb[0].mxu0
        %v948 = vadd.f32 %v686, %v947
        %v949 = vpop.f32.mrb[0].mxu0
        %v950 = vadd.f32 %v690, %v949
        %v951 = vpop.f32.mrb[0].mxu0
        %v952 = vadd.f32 %v686, %v951
        %v953 = vpop.f32.mrb[0].mxu0
        %v954 = vadd.f32 %v690, %v953
        %955 = vmatprep.mubr.bf16.mxu0 0
        %956 = vmatmul.mubr.bf16.gmra.mrb[0].mxu0 %v647
        %v957 = vpop.f32.mrb[0].mxu0
        %v958 = vadd.f32 %v686, %v957
        %v959 = vpop.f32.mrb[0].mxu0
        %v960 = vadd.f32 %v690, %v959
        %v961 = vpop.f32.mrb[0].mxu0
        %v962 = vadd.f32 %v686, %v961
        %v963 = vpop.f32.mrb[0].mxu0
        %v964 = vadd.f32 %v690, %v963
        %965 = vmatprep.mubr.bf16.mxu0 0
        %966 = vmatmul.mubr.bf16.gmra.mrb[0].mxu0 %v648
        %v967 = vpop.f32.mrb[0].mxu0
        %v968 = vadd.f32 %v686, %v967
        %v969 = vpop.f32.mrb[0].mxu0
        %v970 = vadd.f32 %v690, %v969
        %v971 = vpop.f32.mrb[0].mxu0
        %v972 = vadd.f32 %v686, %v971
        %v973 = vpop.f32.mrb[0].mxu0
        %v974 = vadd.f32 %v690, %v973
        %975 = vdwg.mxu0
        %976 = vmatprep.subr.bf16.mxu0 %v802
        %977 = vmatpush1.bf16.msra.mxu0 %v801
        %978 = vmatprep.subr.bf16.mxu0 %v806
        %979 = vmatpush1.bf16.msra.mxu0 %v805
        %980 = vmatprep.subr.bf16.mxu0 %v810
        %981 = vmatpush1.bf16.msra.mxu0 %v809
        %982 = vmatprep.subr.bf16.mxu0 %v814
        %983 = vmatpush1.bf16.msra.mxu0 %v813
        %984 = vmatprep.subr.bf16.mxu0 %v818
        %985 = vmatpush1.bf16.msra.mxu0 %v817
        %986 = vmatprep.subr.bf16.mxu0 %v822
        %987 = vmatpush1.bf16.msra.mxu0 %v821
        %988 = vmatprep.subr.bf16.mxu0 %v826
        %989 = vmatpush1.bf16.msra.mxu0 %v825
        %990 = vmatprep.subr.bf16.mxu0 %v830
        %991 = vmatpush1.bf16.msra.mxu0 %v829
        %992 = vmatprep.subr.bf16.mxu0 0
        %993 = vmatpush1.bf16.msra.mxu0 0
        %994 = vmatprep.subr.bf16.mxu0 0
        %995 = vmatpush1.bf16.msra.mxu0 0
        %996 = vmatprep.subr.bf16.mxu0 0
        %997 = vmatpush1.bf16.msra.mxu0 0
        %998 = vmatprep.subr.bf16.mxu0 0
        %999 = vmatpush1.bf16.msra.mxu0 0
        %1000 = vmatprep.subr.bf16.mxu0 0
        %1001 = vmatpush1.bf16.msra.mxu0 0
        %1002 = vmatprep.subr.bf16.mxu0 0
        %1003 = vmatpush1.bf16.msra.mxu0 0
        %1004 = vmatprep.subr.bf16.mxu0 0
        %1005 = vmatpush1.bf16.msra.mxu0 0
        %1006 = vmatprep.subr.bf16.mxu0 0
        %1007 = vmatpush1.bf16.msra.mxu0 0
        %1008 = vmatprep.mubr.bf16.mxu0 0
        %1009 = vmatmul.mubr.bf16.gmra.mrb[0].mxu0 %v641
        %v1010 = vpop.f32.mrb[0].mxu0
        %v1011 = vadd.f32 %v694, %v1010
        %v1012 = vpop.f32.mrb[0].mxu0
        %v1013 = vadd.f32 %v698, %v1012
        %v1014 = vpop.f32.mrb[0].mxu0
        %v1015 = vadd.f32 %v694, %v1014
        %v1016 = vpop.f32.mrb[0].mxu0
        %v1017 = vadd.f32 %v698, %v1016
        %1018 = vmatprep.mubr.bf16.mxu0 0
        %1019 = vmatmul.mubr.bf16.gmra.mrb[0].mxu0 %v642
        %v1020 = vpop.f32.mrb[0].mxu0
        %v1021 = vadd.f32 %v694, %v1020
        %v1022 = vpop.f32.mrb[0].mxu0
        %v1023 = vadd.f32 %v698, %v1022
        %v1024 = vpop.f32.mrb[0].mxu0
        %v1025 = vadd.f32 %v694, %v1024
        %v1026 = vpop.f32.mrb[0].mxu0
        %v1027 = vadd.f32 %v698, %v1026
        %1028 = vmatprep.mubr.bf16.mxu0 0
        %1029 = vmatmul.mubr.bf16.gmra.mrb[0].mxu0 %v643
        %v1030 = vpop.f32.mrb[0].mxu0
        %v1031 = vadd.f32 %v694, %v1030
        %v1032 = vpop.f32.mrb[0].mxu0
        %v1033 = vadd.f32 %v698, %v1032
        %v1034 = vpop.f32.mrb[0].mxu0
        %v1035 = vadd.f32 %v694, %v1034
        %v1036 = vpop.f32.mrb[0].mxu0
        %v1037 = vadd.f32 %v698, %v1036
        %1038 = vmatprep.mubr.bf16.mxu0 0
        %1039 = vmatmul.mubr.bf16.gmra.mrb[0].mxu0 %v644
        %v1040 = vpop.f32.mrb[0].mxu0
        %v1041 = vadd.f32 %v694, %v1040
        %v1042 = vpop.f32.mrb[0].mxu0
        %v1043 = vadd.f32 %v698, %v1042
        %v1044 = vpop.f32.mrb[0].mxu0
        %v1045 = vadd.f32 %v694, %v1044
        %v1046 = vpop.f32.mrb[0].mxu0
        %v1047 = vadd.f32 %v698, %v1046
        %1048 = vmatprep.mubr.bf16.mxu0 0
        %1049 = vmatmul.mubr.bf16.gmra.mrb[0].mxu0 %v645
        %v1050 = vpop.f32.mrb[0].mxu0
        %v1051 = vadd.f32 %v694, %v1050
        %v1052 = vpop.f32.mrb[0].mxu0
        %v1053 = vadd.f32 %v698, %v1052
        %v1054 = vpop.f32.mrb[0].mxu0
        %v1055 = vadd.f32 %v694, %v1054
        %v1056 = vpop.f32.mrb[0].mxu0
        %v1057 = vadd.f32 %v698, %v1056
        %1058 = vmatprep.mubr.bf16.mxu0 0
        %1059 = vmatmul.mubr.bf16.gmra.mrb[0].mxu0 %v646
        %v1060 = vpop.f32.mrb[0].mxu0
        %v1061 = vadd.f32 %v694, %v1060
        %v1062 = vpop.f32.mrb[0].mxu0
        %v1063 = vadd.f32 %v698, %v1062
        %v1064 = vpop.f32.mrb[0].mxu0
        %v1065 = vadd.f32 %v694, %v1064
        %v1066 = vpop.f32.mrb[0].mxu0
        %v1067 = vadd.f32 %v698, %v1066
        %1068 = vmatprep.mubr.bf16.mxu0 0
        %1069 = vmatmul.mubr.bf16.gmra.mrb[0].mxu0 %v647
        %v1070 = vpop.f32.mrb[0].mxu0
        %v1071 = vadd.f32 %v694, %v1070
        %v1072 = vpop.f32.mrb[0].mxu0
        %v1073 = vadd.f32 %v698, %v1072
        %v1074 = vpop.f32.mrb[0].mxu0
        %v1075 = vadd.f32 %v694, %v1074
        %v1076 = vpop.f32.mrb[0].mxu0
        %v1077 = vadd.f32 %v698, %v1076
        %1078 = vmatprep.mubr.bf16.mxu0 0
        %1079 = vmatmul.mubr.bf16.gmra.mrb[0].mxu0 %v648
        %v1080 = vpop.f32.mrb[0].mxu0
        %v1081 = vadd.f32 %v694, %v1080
        %v1082 = vpop.f32.mrb[0].mxu0
        %v1083 = vadd.f32 %v698, %v1082
        %v1084 = vpop.f32.mrb[0].mxu0
        %v1085 = vadd.f32 %v694, %v1084
        %v1086 = vpop.f32.mrb[0].mxu0
        %v1087 = vadd.f32 %v698, %v1086
        %1088 = vdwg.mxu0
        %v1089 = vmul.f32 %v898, %v898
        %v1090 = vmul.f32 %v900, %v900
        %v1091 = vmul.f32 %v1011, %v1011
        %v1092 = vmul.f32 %v1013, %v1013
        %v1093 = vmul.f32 %v902, %v902
        %v1094 = vmul.f32 %v904, %v904
        %v1095 = vmul.f32 %v1015, %v1015
        %v1096 = vmul.f32 %v1017, %v1017
        %v1097 = vmul.f32 %v908, %v908
        %v1098 = vmul.f32 %v910, %v910
        %v1099 = vmul.f32 %v1021, %v1021
        %v1100 = vmul.f32 %v1023, %v1023
        %v1101 = vmul.f32 %v912, %v912
        %v1102 = vmul.f32 %v914, %v914
        %v1103 = vmul.f32 %v1025, %v1025
        %v1104 = vmul.f32 %v1027, %v1027
        %v1105 = vmul.f32 %v918, %v918
        %v1106 = vmul.f32 %v920, %v920
        %v1107 = vmul.f32 %v1031, %v1031
        %v1108 = vmul.f32 %v1033, %v1033
        %v1109 = vmul.f32 %v922, %v922
        %v1110 = vmul.f32 %v924, %v924
        %v1111 = vmul.f32 %v1035, %v1035
        %v1112 = vmul.f32 %v1037, %v1037
        %v1113 = vmul.f32 %v928, %v928
        %v1114 = vmul.f32 %v930, %v930
        %v1115 = vmul.f32 %v1041, %v1041
        %v1116 = vmul.f32 %v1043, %v1043
        %v1117 = vmul.f32 %v932, %v932
        %v1118 = vmul.f32 %v934, %v934
        %v1119 = vmul.f32 %v1045, %v1045
        %v1120 = vmul.f32 %v1047, %v1047
        %v1121 = vmul.f32 %v938, %v938
        %v1122 = vmul.f32 %v940, %v940
        %v1123 = vmul.f32 %v1051, %v1051
        %v1124 = vmul.f32 %v1053, %v1053
        %v1125 = vmul.f32 %v942, %v942
        %v1126 = vmul.f32 %v944, %v944
        %v1127 = vmul.f32 %v1055, %v1055
        %v1128 = vmul.f32 %v1057, %v1057
        %v1129 = vmul.f32 %v948, %v948
        %v1130 = vmul.f32 %v950, %v950
        %v1131 = vmul.f32 %v1061, %v1061
        %v1132 = vmul.f32 %v1063, %v1063
        %v1133 = vmul.f32 %v952, %v952
        %v1134 = vmul.f32 %v954, %v954
        %v1135 = vmul.f32 %v1065, %v1065
        %v1136 = vmul.f32 %v1067, %v1067
        %v1137 = vmul.f32 %v958, %v958
        %v1138 = vmul.f32 %v960, %v960
        %v1139 = vmul.f32 %v1071, %v1071
        %v1140 = vmul.f32 %v1073, %v1073
        %v1141 = vmul.f32 %v962, %v962
        %v1142 = vmul.f32 %v964, %v964
        %v1143 = vmul.f32 %v1075, %v1075
        %v1144 = vmul.f32 %v1077, %v1077
        %v1145 = vmul.f32 %v968, %v968
        %v1146 = vmul.f32 %v970, %v970
        %v1147 = vmul.f32 %v1081, %v1081
        %v1148 = vmul.f32 %v1083, %v1083
        %v1149 = vmul.f32 %v972, %v972
        %v1150 = vmul.f32 %v974, %v974
        %v1151 = vmul.f32 %v1085, %v1085
        %v1152 = vmul.f32 %v1087, %v1087
        %v1153 = vmul.f32 %v898, %v1089
        %v1154 = vmul.f32 %v900, %v1090
        %v1155 = vmul.f32 %v1011, %v1091
        %v1156 = vmul.f32 %v1013, %v1092
        %v1157 = vmul.f32 %v902, %v1093
        %v1158 = vmul.f32 %v904, %v1094
        %v1159 = vmul.f32 %v1015, %v1095
        %v1160 = vmul.f32 %v1017, %v1096
        %v1161 = vmul.f32 %v908, %v1097
        %v1162 = vmul.f32 %v910, %v1098
        %v1163 = vmul.f32 %v1021, %v1099
        %v1164 = vmul.f32 %v1023, %v1100
        %v1165 = vmul.f32 %v912, %v1101
        %v1166 = vmul.f32 %v914, %v1102
        %v1167 = vmul.f32 %v1025, %v1103
        %v1168 = vmul.f32 %v1027, %v1104
        %v1169 = vmul.f32 %v918, %v1105
        %v1170 = vmul.f32 %v920, %v1106
        %v1171 = vmul.f32 %v1031, %v1107
        %v1172 = vmul.f32 %v1033, %v1108
        %v1173 = vmul.f32 %v922, %v1109
        %v1174 = vmul.f32 %v924, %v1110
        %v1175 = vmul.f32 %v1035, %v1111
        %v1176 = vmul.f32 %v1037, %v1112
        %v1177 = vmul.f32 %v928, %v1113
        %v1178 = vmul.f32 %v930, %v1114
        %v1179 = vmul.f32 %v1041, %v1115
        %v1180 = vmul.f32 %v1043, %v1116
        %v1181 = vmul.f32 %v932, %v1117
        %v1182 = vmul.f32 %v934, %v1118
        %v1183 = vmul.f32 %v1045, %v1119
        %v1184 = vmul.f32 %v1047, %v1120
        %v1185 = vmul.f32 %v938, %v1121
        %v1186 = vmul.f32 %v940, %v1122
        %v1187 = vmul.f32 %v1051, %v1123
        %v1188 = vmul.f32 %v1053, %v1124
        %v1189 = vmul.f32 %v942, %v1125
        %v1190 = vmul.f32 %v944, %v1126
        %v1191 = vmul.f32 %v1055, %v1127
        %v1192 = vmul.f32 %v1057, %v1128
        %v1193 = vmul.f32 %v948, %v1129
        %v1194 = vmul.f32 %v950, %v1130
        %v1195 = vmul.f32 %v1061, %v1131
        %v1196 = vmul.f32 %v1063, %v1132
        %v1197 = vmul.f32 %v952, %v1133
        %v1198 = vmul.f32 %v954, %v1134
        %v1199 = vmul.f32 %v1065, %v1135
        %v1200 = vmul.f32 %v1067, %v1136
        %v1201 = vmul.f32 %v958, %v1137
        %v1202 = vmul.f32 %v960, %v1138
        %v1203 = vmul.f32 %v1071, %v1139
        %v1204 = vmul.f32 %v1073, %v1140
        %v1205 = vmul.f32 %v962, %v1141
        %v1206 = vmul.f32 %v964, %v1142
        %v1207 = vmul.f32 %v1075, %v1143
        %v1208 = vmul.f32 %v1077, %v1144
        %v1209 = vmul.f32 %v968, %v1145
        %v1210 = vmul.f32 %v970, %v1146
        %v1211 = vmul.f32 %v1081, %v1147
        %v1212 = vmul.f32 %v1083, %v1148
        %v1213 = vmul.f32 %v972, %v1149
        %v1214 = vmul.f32 %v974, %v1150
        %v1215 = vmul.f32 %v1085, %v1151
        %v1216 = vmul.f32 %v1087, %v1152
        %v1217 = vmul.f32 %v1153, 0.044715
        %v1218 = vmul.f32 %v1154, 0.044715
        %v1219 = vmul.f32 %v1155, 0.044715
        %v1220 = vmul.f32 %v1156, 0.044715
        %v1221 = vmul.f32 %v1157, 0.044715
        %v1222 = vmul.f32 %v1158, 0.044715
        %v1223 = vmul.f32 %v1159, 0.044715
        %v1224 = vmul.f32 %v1160, 0.044715
        %v1225 = vmul.f32 %v1161, 0.044715
        %v1226 = vmul.f32 %v1162, 0.044715
        %v1227 = vmul.f32 %v1163, 0.044715
        %v1228 = vmul.f32 %v1164, 0.044715
        %v1229 = vmul.f32 %v1165, 0.044715
        %v1230 = vmul.f32 %v1166, 0.044715
        %v1231 = vmul.f32 %v1167, 0.044715
        %v1232 = vmul.f32 %v1168, 0.044715
        %v1233 = vmul.f32 %v1169, 0.044715
        %v1234 = vmul.f32 %v1170, 0.044715
        %v1235 = vmul.f32 %v1171, 0.044715
        %v1236 = vmul.f32 %v1172, 0.044715
        %v1237 = vmul.f32 %v1173, 0.044715
        %v1238 = vmul.f32 %v1174, 0.044715
        %v1239 = vmul.f32 %v1175, 0.044715
        %v1240 = vmul.f32 %v1176, 0.044715
        %v1241 = vmul.f32 %v1177, 0.044715
        %v1242 = vmul.f32 %v1178, 0.044715
        %v1243 = vmul.f32 %v1179, 0.044715
        %v1244 = vmul.f32 %v1180, 0.044715
        %v1245 = vmul.f32 %v1181, 0.044715
        %v1246 = vmul.f32 %v1182, 0.044715
        %v1247 = vmul.f32 %v1183, 0.044715
        %v1248 = vmul.f32 %v1184, 0.044715
        %v1249 = vmul.f32 %v1185, 0.044715
        %v1250 = vmul.f32 %v1186, 0.044715
        %v1251 = vmul.f32 %v1187, 0.044715
        %v1252 = vmul.f32 %v1188, 0.044715
        %v1253 = vmul.f32 %v1189, 0.044715
        %v1254 = vmul.f32 %v1190, 0.044715
        %v1255 = vmul.f32 %v1191, 0.044715
        %v1256 = vmul.f32 %v1192, 0.044715
        %v1257 = vmul.f32 %v1193, 0.044715
        %v1258 = vmul.f32 %v1194, 0.044715
        %v1259 = vmul.f32 %v1195, 0.044715
        %v1260 = vmul.f32 %v1196, 0.044715
        %v1261 = vmul.f32 %v1197, 0.044715
        %v1262 = vmul.f32 %v1198, 0.044715
        %v1263 = vmul.f32 %v1199, 0.044715
        %v1264 = vmul.f32 %v1200, 0.044715
        %v1265 = vmul.f32 %v1201, 0.044715
        %v1266 = vmul.f32 %v1202, 0.044715
        %v1267 = vmul.f32 %v1203, 0.044715
        %v1268 = vmul.f32 %v1204, 0.044715
        %v1269 = vmul.f32 %v1205, 0.044715
        %v1270 = vmul.f32 %v1206, 0.044715
        %v1271 = vmul.f32 %v1207, 0.044715
        %v1272 = vmul.f32 %v1208, 0.044715
        %v1273 = vmul.f32 %v1209, 0.044715
        %v1274 = vmul.f32 %v1210, 0.044715
        %v1275 = vmul.f32 %v1211, 0.044715
        %v1276 = vmul.f32 %v1212, 0.044715
        %v1277 = vmul.f32 %v1213, 0.044715
        %v1278 = vmul.f32 %v1214, 0.044715
        %v1279 = vmul.f32 %v1215, 0.044715
        %v1280 = vmul.f32 %v1216, 0.044715
        %v1281 = vadd.f32 %v898, %v1217
        %v1282 = vadd.f32 %v900, %v1218
        %v1283 = vadd.f32 %v1011, %v1219
        %v1284 = vadd.f32 %v1013, %v1220
        %v1285 = vadd.f32 %v902, %v1221
        %v1286 = vadd.f32 %v904, %v1222
        %v1287 = vadd.f32 %v1015, %v1223
        %v1288 = vadd.f32 %v1017, %v1224
        %v1289 = vadd.f32 %v908, %v1225
        %v1290 = vadd.f32 %v910, %v1226
        %v1291 = vadd.f32 %v1021, %v1227
        %v1292 = vadd.f32 %v1023, %v1228
        %v1293 = vadd.f32 %v912, %v1229
        %v1294 = vadd.f32 %v914, %v1230
        %v1295 = vadd.f32 %v1025, %v1231
        %v1296 = vadd.f32 %v1027, %v1232
        %v1297 = vadd.f32 %v918, %v1233
        %v1298 = vadd.f32 %v920, %v1234
        %v1299 = vadd.f32 %v1031, %v1235
        %v1300 = vadd.f32 %v1033, %v1236
        %v1301 = vadd.f32 %v922, %v1237
        %v1302 = vadd.f32 %v924, %v1238
        %v1303 = vadd.f32 %v1035, %v1239
        %v1304 = vadd.f32 %v1037, %v1240
        %v1305 = vadd.f32 %v928, %v1241
        %v1306 = vadd.f32 %v930, %v1242
        %v1307 = vadd.f32 %v1041, %v1243
        %v1308 = vadd.f32 %v1043, %v1244
        %v1309 = vadd.f32 %v932, %v1245
        %v1310 = vadd.f32 %v934, %v1246
        %v1311 = vadd.f32 %v1045, %v1247
        %v1312 = vadd.f32 %v1047, %v1248
        %v1313 = vadd.f32 %v938, %v1249
        %v1314 = vadd.f32 %v940, %v1250
        %v1315 = vadd.f32 %v1051, %v1251
        %v1316 = vadd.f32 %v1053, %v1252
        %v1317 = vadd.f32 %v942, %v1253
        %v1318 = vadd.f32 %v944, %v1254
        %v1319 = vadd.f32 %v1055, %v1255
        %v1320 = vadd.f32 %v1057, %v1256
        %v1321 = vadd.f32 %v948, %v1257
        %v1322 = vadd.f32 %v950, %v1258
        %v1323 = vadd.f32 %v1061, %v1259
        %v1324 = vadd.f32 %v1063, %v1260
        %v1325 = vadd.f32 %v952, %v1261
        %v1326 = vadd.f32 %v954, %v1262
        %v1327 = vadd.f32 %v1065, %v1263
        %v1328 = vadd.f32 %v1067, %v1264
        %v1329 = vadd.f32 %v958, %v1265
        %v1330 = vadd.f32 %v960, %v1266
        %v1331 = vadd.f32 %v1071, %v1267
        %v1332 = vadd.f32 %v1073, %v1268
        %v1333 = vadd.f32 %v962, %v1269
        %v1334 = vadd.f32 %v964, %v1270
        %v1335 = vadd.f32 %v1075, %v1271
        %v1336 = vadd.f32 %v1077, %v1272
        %v1337 = vadd.f32 %v968, %v1273
        %v1338 = vadd.f32 %v970, %v1274
        %v1339 = vadd.f32 %v1081, %v1275
        %v1340 = vadd.f32 %v1083, %v1276
        %v1341 = vadd.f32 %v972, %v1277
        %v1342 = vadd.f32 %v974, %v1278
        %v1343 = vadd.f32 %v1085, %v1279
        %v1344 = vadd.f32 %v1087, %v1280
        %v1345 = vmul.f32 %v1281, 0.7978846
        %v1346 = vmul.f32 %v1282, 0.7978846
        %v1347 = vmul.f32 %v1283, 0.7978846
        %v1348 = vmul.f32 %v1284, 0.7978846
        %v1349 = vmul.f32 %v1285, 0.7978846
        %v1350 = vmul.f32 %v1286, 0.7978846
        %v1351 = vmul.f32 %v1287, 0.7978846
        %v1352 = vmul.f32 %v1288, 0.7978846
        %v1353 = vmul.f32 %v1289, 0.7978846
        %v1354 = vmul.f32 %v1290, 0.7978846
        %v1355 = vmul.f32 %v1291, 0.7978846
        %v1356 = vmul.f32 %v1292, 0.7978846
        %v1357 = vmul.f32 %v1293, 0.7978846
        %v1358 = vmul.f32 %v1294, 0.7978846
        %v1359 = vmul.f32 %v1295, 0.7978846
        %v1360 = vmul.f32 %v1296, 0.7978846
        %v1361 = vmul.f32 %v1297, 0.7978846
        %v1362 = vmul.f32 %v1298, 0.7978846
        %v1363 = vmul.f32 %v1299, 0.7978846
        %v1364 = vmul.f32 %v1300, 0.7978846
        %v1365 = vmul.f32 %v1301, 0.7978846
        %v1366 = vmul.f32 %v1302, 0.7978846
        %v1367 = vmul.f32 %v1303, 0.7978846
        %v1368 = vmul.f32 %v1304, 0.7978846
        %v1369 = vmul.f32 %v1305, 0.7978846
        %v1370 = vmul.f32 %v1306, 0.7978846
        %v1371 = vmul.f32 %v1307, 0.7978846
        %v1372 = vmul.f32 %v1308, 0.7978846
        %v1373 = vmul.f32 %v1309, 0.7978846
        %v1374 = vmul.f32 %v1310, 0.7978846
        %v1375 = vmul.f32 %v1311, 0.7978846
        %v1376 = vmul.f32 %v1312, 0.7978846
        %v1377 = vmul.f32 %v1313, 0.7978846
        %v1378 = vmul.f32 %v1314, 0.7978846
        %v1379 = vmul.f32 %v1315, 0.7978846
        %v1380 = vmul.f32 %v1316, 0.7978846
        %v1381 = vmul.f32 %v1317, 0.7978846
        %v1382 = vmul.f32 %v1318, 0.7978846
        %v1383 = vmul.f32 %v1319, 0.7978846
        %v1384 = vmul.f32 %v1320, 0.7978846
        %v1385 = vmul.f32 %v1321, 0.7978846
        %v1386 = vmul.f32 %v1322, 0.7978846
        %v1387 = vmul.f32 %v1323, 0.7978846
        %v1388 = vmul.f32 %v1324, 0.7978846
        %v1389 = vmul.f32 %v1325, 0.7978846
        %v1390 = vmul.f32 %v1326, 0.7978846
        %v1391 = vmul.f32 %v1327, 0.7978846
        %v1392 = vmul.f32 %v1328, 0.7978846
        %v1393 = vmul.f32 %v1329, 0.7978846
        %v1394 = vmul.f32 %v1330, 0.7978846
        %v1395 = vmul.f32 %v1331, 0.7978846
        %v1396 = vmul.f32 %v1332, 0.7978846
        %v1397 = vmul.f32 %v1333, 0.7978846
        %v1398 = vmul.f32 %v1334, 0.7978846
        %v1399 = vmul.f32 %v1335, 0.7978846
        %v1400 = vmul.f32 %v1336, 0.7978846
        %v1401 = vmul.f32 %v1337, 0.7978846
        %v1402 = vmul.f32 %v1338, 0.7978846
        %v1403 = vmul.f32 %v1339, 0.7978846
        %v1404 = vmul.f32 %v1340, 0.7978846
        %v1405 = vmul.f32 %v1341, 0.7978846
        %v1406 = vmul.f32 %v1342, 0.7978846
        %v1407 = vmul.f32 %v1343, 0.7978846
        %v1408 = vmul.f32 %v1344, 0.7978846
        %v1409 = vtanh.pop %v1345
        %v1410 = vtanh.pop %v1346
        %v1411 = vtanh.pop %v1347
        %v1412 = vtanh.pop %v1348
        %v1413 = vtanh.pop %v1349
        %v1414 = vtanh.pop %v1350
        %v1415 = vtanh.pop %v1351
        %v1416 = vtanh.pop %v1352
        %v1417 = vtanh.pop %v1353
        %v1418 = vtanh.pop %v1354
        %v1419 = vtanh.pop %v1355
        %v1420 = vtanh.pop %v1356
        %v1421 = vtanh.pop %v1357
        %v1422 = vtanh.pop %v1358
        %v1423 = vtanh.pop %v1359
        %v1424 = vtanh.pop %v1360
        %v1425 = vtanh.pop %v1361
        %v1426 = vtanh.pop %v1362
        %v1427 = vtanh.pop %v1363
        %v1428 = vtanh.pop %v1364
        %v1429 = vtanh.pop %v1365
        %v1430 = vtanh.pop %v1366
        %v1431 = vtanh.pop %v1367
        %v1432 = vtanh.pop %v1368
        %v1433 = vtanh.pop %v1369
        %v1434 = vtanh.pop %v1370
        %v1435 = vtanh.pop %v1371
        %v1436 = vtanh.pop %v1372
        %v1437 = vtanh.pop %v1373
        %v1438 = vtanh.pop %v1374
        %v1439 = vtanh.pop %v1375
        %v1440 = vtanh.pop %v1376
        %v1441 = vtanh.pop %v1377
        %v1442 = vtanh.pop %v1378
        %v1443 = vtanh.pop %v1379
        %v1444 = vtanh.pop %v1380
        %v1445 = vtanh.pop %v1381
        %v1446 = vtanh.pop %v1382
        %v1447 = vtanh.pop %v1383
        %v1448 = vtanh.pop %v1384
        %v1449 = vtanh.pop %v1385
        %v1450 = vtanh.pop %v1386
        %v1451 = vtanh.pop %v1387
        %v1452 = vtanh.pop %v1388
        %v1453 = vtanh.pop %v1389
        %v1454 = vtanh.pop %v1390
        %v1455 = vtanh.pop %v1391
        %v1456 = vtanh.pop %v1392
        %v1457 = vtanh.pop %v1393
        %v1458 = vtanh.pop %v1394
        %v1459 = vtanh.pop %v1395
        %v1460 = vtanh.pop %v1396
        %v1461 = vtanh.pop %v1397
        %v1462 = vtanh.pop %v1398
        %v1463 = vtanh.pop %v1399
        %v1464 = vtanh.pop %v1400
        %v1465 = vtanh.pop %v1401
        %v1466 = vtanh.pop %v1402
        %v1467 = vtanh.pop %v1403
        %v1468 = vtanh.pop %v1404
        %v1469 = vtanh.pop %v1405
        %v1470 = vtanh.pop %v1406
        %v1471 = vtanh.pop %v1407
        %v1472 = vtanh.pop %v1408
        %v1473 = vadd.f32 %v1409, 1.0
        %v1474 = vadd.f32 %v1410, 1.0
        %v1475 = vadd.f32 %v1411, 1.0
        %v1476 = vadd.f32 %v1412, 1.0
        %v1477 = vadd.f32 %v1413, 1.0
        %v1478 = vadd.f32 %v1414, 1.0
        %v1479 = vadd.f32 %v1415, 1.0
        %v1480 = vadd.f32 %v1416, 1.0
        %v1481 = vadd.f32 %v1417, 1.0
        %v1482 = vadd.f32 %v1418, 1.0
        %v1483 = vadd.f32 %v1419, 1.0
        %v1484 = vadd.f32 %v1420, 1.0
        %v1485 = vadd.f32 %v1421, 1.0
        %v1486 = vadd.f32 %v1422, 1.0
        %v1487 = vadd.f32 %v1423, 1.0
        %v1488 = vadd.f32 %v1424, 1.0
        %v1489 = vadd.f32 %v1425, 1.0
        %v1490 = vadd.f32 %v1426, 1.0
        %v1491 = vadd.f32 %v1427, 1.0
        %v1492 = vadd.f32 %v1428, 1.0
        %v1493 = vadd.f32 %v1429, 1.0
        %v1494 = vadd.f32 %v1430, 1.0
        %v1495 = vadd.f32 %v1431, 1.0
        %v1496 = vadd.f32 %v1432, 1.0
        %v1497 = vadd.f32 %v1433, 1.0
        %v1498 = vadd.f32 %v1434, 1.0
        %v1499 = vadd.f32 %v1435, 1.0
        %v1500 = vadd.f32 %v1436, 1.0
        %v1501 = vadd.f32 %v1437, 1.0
        %v1502 = vadd.f32 %v1438, 1.0
        %v1503 = vadd.f32 %v1439, 1.0
        %v1504 = vadd.f32 %v1440, 1.0
        %v1505 = vadd.f32 %v1441, 1.0
        %v1506 = vadd.f32 %v1442, 1.0
        %v1507 = vadd.f32 %v1443, 1.0
        %v1508 = vadd.f32 %v1444, 1.0
        %v1509 = vadd.f32 %v1445, 1.0
        %v1510 = vadd.f32 %v1446, 1.0
        %v1511 = vadd.f32 %v1447, 1.0
        %v1512 = vadd.f32 %v1448, 1.0
        %v1513 = vadd.f32 %v1449, 1.0
        %v1514 = vadd.f32 %v1450, 1.0
        %v1515 = vadd.f32 %v1451, 1.0
        %v1516 = vadd.f32 %v1452, 1.0
        %v1517 = vadd.f32 %v1453, 1.0
        %v1518 = vadd.f32 %v1454, 1.0
        %v1519 = vadd.f32 %v1455, 1.0
        %v1520 = vadd.f32 %v1456, 1.0
        %v1521 = vadd.f32 %v1457, 1.0
        %v1522 = vadd.f32 %v1458, 1.0
        %v1523 = vadd.f32 %v1459, 1.0
        %v1524 = vadd.f32 %v1460, 1.0
        %v1525 = vadd.f32 %v1461, 1.0
        %v1526 = vadd.f32 %v1462, 1.0
        %v1527 = vadd.f32 %v1463, 1.0
        %v1528 = vadd.f32 %v1464, 1.0
        %v1529 = vadd.f32 %v1465, 1.0
        %v1530 = vadd.f32 %v1466, 1.0
        %v1531 = vadd.f32 %v1467, 1.0
        %v1532 = vadd.f32 %v1468, 1.0
        %v1533 = vadd.f32 %v1469, 1.0
        %v1534 = vadd.f32 %v1470, 1.0
        %v1535 = vadd.f32 %v1471, 1.0
        %v1536 = vadd.f32 %v1472, 1.0
        %v1537 = vmul.f32 %v1473, 0.5
        %v1538 = vmul.f32 %v1474, 0.5
        %v1539 = vmul.f32 %v1475, 0.5
        %v1540 = vmul.f32 %v1476, 0.5
        %v1541 = vmul.f32 %v1477, 0.5
        %v1542 = vmul.f32 %v1478, 0.5
        %v1543 = vmul.f32 %v1479, 0.5
        %v1544 = vmul.f32 %v1480, 0.5
        %v1545 = vmul.f32 %v1481, 0.5
        %v1546 = vmul.f32 %v1482, 0.5
        %v1547 = vmul.f32 %v1483, 0.5
        %v1548 = vmul.f32 %v1484, 0.5
        %v1549 = vmul.f32 %v1485, 0.5
        %v1550 = vmul.f32 %v1486, 0.5
        %v1551 = vmul.f32 %v1487, 0.5
        %v1552 = vmul.f32 %v1488, 0.5
        %v1553 = vmul.f32 %v1489, 0.5
        %v1554 = vmul.f32 %v1490, 0.5
        %v1555 = vmul.f32 %v1491, 0.5
        %v1556 = vmul.f32 %v1492, 0.5
        %v1557 = vmul.f32 %v1493, 0.5
        %v1558 = vmul.f32 %v1494, 0.5
        %v1559 = vmul.f32 %v1495, 0.5
        %v1560 = vmul.f32 %v1496, 0.5
        %v1561 = vmul.f32 %v1497, 0.5
        %v1562 = vmul.f32 %v1498, 0.5
        %v1563 = vmul.f32 %v1499, 0.5
        %v1564 = vmul.f32 %v1500, 0.5
        %v1565 = vmul.f32 %v1501, 0.5
        %v1566 = vmul.f32 %v1502, 0.5
        %v1567 = vmul.f32 %v1503, 0.5
        %v1568 = vmul.f32 %v1504, 0.5
        %v1569 = vmul.f32 %v1505, 0.5
        %v1570 = vmul.f32 %v1506, 0.5
        %v1571 = vmul.f32 %v1507, 0.5
        %v1572 = vmul.f32 %v1508, 0.5
        %v1573 = vmul.f32 %v1509, 0.5
        %v1574 = vmul.f32 %v1510, 0.5
        %v1575 = vmul.f32 %v1511, 0.5
        %v1576 = vmul.f32 %v1512, 0.5
        %v1577 = vmul.f32 %v1513, 0.5
        %v1578 = vmul.f32 %v1514, 0.5
        %v1579 = vmul.f32 %v1515, 0.5
        %v1580 = vmul.f32 %v1516, 0.5
        %v1581 = vmul.f32 %v1517, 0.5
        %v1582 = vmul.f32 %v1518, 0.5
        %v1583 = vmul.f32 %v1519, 0.5
        %v1584 = vmul.f32 %v1520, 0.5
        %v1585 = vmul.f32 %v1521, 0.5
        %v1586 = vmul.f32 %v1522, 0.5
        %v1587 = vmul.f32 %v1523, 0.5
        %v1588 = vmul.f32 %v1524, 0.5
        %v1589 = vmul.f32 %v1525, 0.5
        %v1590 = vmul.f32 %v1526, 0.5
        %v1591 = vmul.f32 %v1527, 0.5
        %v1592 = vmul.f32 %v1528, 0.5
        %v1593 = vmul.f32 %v1529, 0.5
        %v1594 = vmul.f32 %v1530, 0.5
        %v1595 = vmul.f32 %v1531, 0.5
        %v1596 = vmul.f32 %v1532, 0.5
        %v1597 = vmul.f32 %v1533, 0.5
        %v1598 = vmul.f32 %v1534, 0.5
        %v1599 = vmul.f32 %v1535, 0.5
        %v1600 = vmul.f32 %v1536, 0.5
        %v1601 = vmul.f32 %v898, %v1537
        %v1602 = vmul.f32 %v900, %v1538
        %v1603 = vmul.f32 %v1011, %v1539
        %v1604 = vmul.f32 %v1013, %v1540
        %v1605 = vmul.f32 %v902, %v1541
        %v1606 = vmul.f32 %v904, %v1542
        %v1607 = vmul.f32 %v1015, %v1543
        %v1608 = vmul.f32 %v1017, %v1544
        %v1609 = vmul.f32 %v908, %v1545
        %v1610 = vmul.f32 %v910, %v1546
        %v1611 = vmul.f32 %v1021, %v1547
        %v1612 = vmul.f32 %v1023, %v1548
        %v1613 = vmul.f32 %v912, %v1549
        %v1614 = vmul.f32 %v914, %v1550
        %v1615 = vmul.f32 %v1025, %v1551
        %v1616 = vmul.f32 %v1027, %v1552
        %v1617 = vmul.f32 %v918, %v1553
        %v1618 = vmul.f32 %v920, %v1554
        %v1619 = vmul.f32 %v1031, %v1555
        %v1620 = vmul.f32 %v1033, %v1556
        %v1621 = vmul.f32 %v922, %v1557
        %v1622 = vmul.f32 %v924, %v1558
        %v1623 = vmul.f32 %v1035, %v1559
        %v1624 = vmul.f32 %v1037, %v1560
        %v1625 = vmul.f32 %v928, %v1561
        %v1626 = vmul.f32 %v930, %v1562
        %v1627 = vmul.f32 %v1041, %v1563
        %v1628 = vmul.f32 %v1043, %v1564
        %v1629 = vmul.f32 %v932, %v1565
        %v1630 = vmul.f32 %v934, %v1566
        %v1631 = vmul.f32 %v1045, %v1567
        %v1632 = vmul.f32 %v1047, %v1568
        %v1633 = vmul.f32 %v938, %v1569
        %v1634 = vmul.f32 %v940, %v1570
        %v1635 = vmul.f32 %v1051, %v1571
        %v1636 = vmul.f32 %v1053, %v1572
        %v1637 = vmul.f32 %v942, %v1573
        %v1638 = vmul.f32 %v944, %v1574
        %v1639 = vmul.f32 %v1055, %v1575
        %v1640 = vmul.f32 %v1057, %v1576
        %v1641 = vmul.f32 %v948, %v1577
        %v1642 = vmul.f32 %v950, %v1578
        %v1643 = vmul.f32 %v1061, %v1579
        %v1644 = vmul.f32 %v1063, %v1580
        %v1645 = vmul.f32 %v952, %v1581
        %v1646 = vmul.f32 %v954, %v1582
        %v1647 = vmul.f32 %v1065, %v1583
        %v1648 = vmul.f32 %v1067, %v1584
        %v1649 = vmul.f32 %v958, %v1585
        %v1650 = vmul.f32 %v960, %v1586
        %v1651 = vmul.f32 %v1071, %v1587
        %v1652 = vmul.f32 %v1073, %v1588
        %v1653 = vmul.f32 %v962, %v1589
        %v1654 = vmul.f32 %v964, %v1590
        %v1655 = vmul.f32 %v1075, %v1591
        %v1656 = vmul.f32 %v1077, %v1592
        %v1657 = vmul.f32 %v968, %v1593
        %v1658 = vmul.f32 %v970, %v1594
        %v1659 = vmul.f32 %v1081, %v1595
        %v1660 = vmul.f32 %v1083, %v1596
        %v1661 = vmul.f32 %v972, %v1597
        %v1662 = vmul.f32 %v974, %v1598
        %v1663 = vmul.f32 %v1085, %v1599
        %v1664 = vmul.f32 %v1087, %v1600
        %v1665 = vpack.c.bf16 %v1605, %v1601
        %v1666 = vpack.c.bf16 %v1606, %v1602
        %v1667 = vpack.c.bf16 %v1607, %v1603
        %v1668 = vpack.c.bf16 %v1608, %v1604
        %v1669 = vpack.c.bf16 %v1613, %v1609
        %v1670 = vpack.c.bf16 %v1614, %v1610
        %v1671 = vpack.c.bf16 %v1615, %v1611
        %v1672 = vpack.c.bf16 %v1616, %v1612
        %v1673 = vpack.c.bf16 %v1621, %v1617
        %v1674 = vpack.c.bf16 %v1622, %v1618
        %v1675 = vpack.c.bf16 %v1623, %v1619
        %v1676 = vpack.c.bf16 %v1624, %v1620
        %v1677 = vpack.c.bf16 %v1629, %v1625
        %v1678 = vpack.c.bf16 %v1630, %v1626
        %v1679 = vpack.c.bf16 %v1631, %v1627
        %v1680 = vpack.c.bf16 %v1632, %v1628
        %v1681 = vpack.c.bf16 %v1637, %v1633
        %v1682 = vpack.c.bf16 %v1638, %v1634
        %v1683 = vpack.c.bf16 %v1639, %v1635
        %v1684 = vpack.c.bf16 %v1640, %v1636
        %v1685 = vpack.c.bf16 %v1645, %v1641
        %v1686 = vpack.c.bf16 %v1646, %v1642
        %v1687 = vpack.c.bf16 %v1647, %v1643
        %v1688 = vpack.c.bf16 %v1648, %v1644
        %v1689 = vpack.c.bf16 %v1653, %v1649
        %v1690 = vpack.c.bf16 %v1654, %v1650
        %v1691 = vpack.c.bf16 %v1655, %v1651
        %v1692 = vpack.c.bf16 %v1656, %v1652
        %v1693 = vpack.c.bf16 %v1661, %v1657
        %v1694 = vpack.c.bf16 %v1662, %v1658
        %v1695 = vpack.c.bf16 %v1663, %v1659
        %v1696 = vpack.c.bf16 %v1664, %v1660
        %v1697 = vld [vmem:[#allocation10] sm:$0xf]
        %v1698 = vld [vmem:[#allocation10 + $0x4] sm:$0xf]
        %v1699 = vld [vmem:[#allocation10 + $0x8] sm:$0xf]
        %v1700 = vld [vmem:[#allocation10 + $0xc] sm:$0xf]
        %v1701 = vld [vmem:[#allocation10 + $0x10] sm:$0xf]
        %v1702 = vld [vmem:[#allocation10 + $0x14] sm:$0xf]
        %v1703 = vld [vmem:[#allocation10 + $0x18] sm:$0xf]
        %v1704 = vld [vmem:[#allocation10 + $0x1c] sm:$0xf]
        %v1705 = vld [vmem:[#allocation10 + $0x20] sm:$0xf]
        %v1706 = vld [vmem:[#allocation10 + $0x24] sm:$0xf]
        %v1707 = vld [vmem:[#allocation10 + $0x28] sm:$0xf]
        %v1708 = vld [vmem:[#allocation10 + $0x2c] sm:$0xf]
        %v1709 = vld [vmem:[#allocation10 + $0x30] sm:$0xf]
        %v1710 = vld [vmem:[#allocation10 + $0x34] sm:$0xf]
        %v1711 = vld [vmem:[#allocation10 + $0x38] sm:$0xf]
        %v1712 = vld [vmem:[#allocation10 + $0x3c] sm:$0xf]
        %v1713 = vld [vmem:[#allocation10 + $0x40] sm:$0xf]
        %v1714 = vld [vmem:[#allocation10 + $0x44] sm:$0xf]
        %v1715 = vld [vmem:[#allocation10 + $0x48] sm:$0xf]
        %v1716 = vld [vmem:[#allocation10 + $0x4c] sm:$0xf]
        %v1717 = vld [vmem:[#allocation10 + $0x50] sm:$0xf]
        %v1718 = vld [vmem:[#allocation10 + $0x54] sm:$0xf]
        %v1719 = vld [vmem:[#allocation10 + $0x58] sm:$0xf]
        %v1720 = vld [vmem:[#allocation10 + $0x5c] sm:$0xf]
        %v1721 = vld [vmem:[#allocation10 + $0x60] sm:$0xf]
        %v1722 = vld [vmem:[#allocation10 + $0x64] sm:$0xf]
        %v1723 = vld [vmem:[#allocation10 + $0x68] sm:$0xf]
        %v1724 = vld [vmem:[#allocation10 + $0x6c] sm:$0xf]
        %v1725 = vld [vmem:[#allocation10 + $0x70] sm:$0xf]
        %v1726 = vld [vmem:[#allocation10 + $0x74] sm:$0xf]
        %v1727 = vld [vmem:[#allocation10 + $0x78] sm:$0xf]
        %v1728 = vld [vmem:[#allocation10 + $0x7c] sm:$0xf]
        %v1729 = vld [vmem:[#allocation10 + $0x80] sm:$0xf]
        %v1730 = vld [vmem:[#allocation10 + $0x84] sm:$0xf]
        %v1731 = vld [vmem:[#allocation10 + $0x88] sm:$0xf]
        %v1732 = vld [vmem:[#allocation10 + $0x8c] sm:$0xf]
        %v1733 = vld [vmem:[#allocation10 + $0x90] sm:$0xf]
        %v1734 = vld [vmem:[#allocation10 + $0x94] sm:$0xf]
        %v1735 = vld [vmem:[#allocation10 + $0x98] sm:$0xf]
        %v1736 = vld [vmem:[#allocation10 + $0x9c] sm:$0xf]
        %v1737 = vld [vmem:[#allocation10 + $0xa0] sm:$0xf]
        %v1738 = vld [vmem:[#allocation10 + $0xa4] sm:$0xf]
        %v1739 = vld [vmem:[#allocation10 + $0xa8] sm:$0xf]
        %v1740 = vld [vmem:[#allocation10 + $0xac] sm:$0xf]
        %v1741 = vld [vmem:[#allocation10 + $0xb0] sm:$0xf]
        %v1742 = vld [vmem:[#allocation10 + $0xb4] sm:$0xf]
        %v1743 = vld [vmem:[#allocation10 + $0xb8] sm:$0xf]
        %v1744 = vld [vmem:[#allocation10 + $0xbc] sm:$0xf]
        %v1745 = vld [vmem:[#allocation10 + $0xc0] sm:$0xf]
        %v1746 = vld [vmem:[#allocation10 + $0xc4] sm:$0xf]
        %v1747 = vld [vmem:[#allocation10 + $0xc8] sm:$0xf]
        %v1748 = vld [vmem:[#allocation10 + $0xcc] sm:$0xf]
        %v1749 = vld [vmem:[#allocation10 + $0xd0] sm:$0xf]
        %v1750 = vld [vmem:[#allocation10 + $0xd4] sm:$0xf]
        %v1751 = vld [vmem:[#allocation10 + $0xd8] sm:$0xf]
        %v1752 = vld [vmem:[#allocation10 + $0xdc] sm:$0xf]
        %v1753 = vld [vmem:[#allocation10 + $0xe0] sm:$0xf]
        %v1754 = vld [vmem:[#allocation10 + $0xe4] sm:$0xf]
        %v1755 = vld [vmem:[#allocation10 + $0xe8] sm:$0xf]
        %v1756 = vld [vmem:[#allocation10 + $0xec] sm:$0xf]
        %v1757 = vld [vmem:[#allocation10 + $0xf0] sm:$0xf]
        %v1758 = vld [vmem:[#allocation10 + $0xf4] sm:$0xf]
        %v1759 = vld [vmem:[#allocation10 + $0xf8] sm:$0xf]
        %v1760 = vld [vmem:[#allocation10 + $0xfc] sm:$0xf]
        %v1825 = vunpack.c.l.b16 %v1697
        %v1826 = vunpack.c.l.b16 %v1698
        %v1827 = vunpack.c.l.b16 %v1699
        %v1828 = vunpack.c.l.b16 %v1700
        %v1829 = vunpack.c.l.b16 %v1701
        %v1830 = vunpack.c.l.b16 %v1702
        %v1831 = vunpack.c.l.b16 %v1703
        %v1832 = vunpack.c.l.b16 %v1704
        %v1833 = vunpack.c.l.b16 %v1705
        %v1834 = vunpack.c.l.b16 %v1706
        %v1835 = vunpack.c.l.b16 %v1707
        %v1836 = vunpack.c.l.b16 %v1708
        %v1837 = vunpack.c.l.b16 %v1709
        %v1838 = vunpack.c.l.b16 %v1710
        %v1839 = vunpack.c.l.b16 %v1711
        %v1840 = vunpack.c.l.b16 %v1712
        %v1841 = vunpack.c.l.b16 %v1713
        %v1842 = vunpack.c.l.b16 %v1714
        %v1843 = vunpack.c.l.b16 %v1715
        %v1844 = vunpack.c.l.b16 %v1716
        %v1845 = vunpack.c.l.b16 %v1717
        %v1846 = vunpack.c.l.b16 %v1718
        %v1847 = vunpack.c.l.b16 %v1719
        %v1848 = vunpack.c.l.b16 %v1720
        %v1849 = vunpack.c.l.b16 %v1721
        %v1850 = vunpack.c.l.b16 %v1722
        %v1851 = vunpack.c.l.b16 %v1723
        %v1852 = vunpack.c.l.b16 %v1724
        %v1853 = vunpack.c.l.b16 %v1725
        %v1854 = vunpack.c.l.b16 %v1726
        %v1855 = vunpack.c.l.b16 %v1727
        %v1856 = vunpack.c.l.b16 %v1728
        %v1857 = vunpack.c.l.b16 %v1729
        %v1858 = vunpack.c.l.b16 %v1730
        %v1859 = vunpack.c.l.b16 %v1731
        %v1860 = vunpack.c.l.b16 %v1732
        %v1861 = vunpack.c.l.b16 %v1733
        %v1862 = vunpack.c.l.b16 %v1734
        %v1863 = vunpack.c.l.b16 %v1735
        %v1864 = vunpack.c.l.b16 %v1736
        %v1865 = vunpack.c.l.b16 %v1737
        %v1866 = vunpack.c.l.b16 %v1738
        %v1867 = vunpack.c.l.b16 %v1739
        %v1868 = vunpack.c.l.b16 %v1740
        %v1869 = vunpack.c.l.b16 %v1741
        %v1870 = vunpack.c.l.b16 %v1742
        %v1871 = vunpack.c.l.b16 %v1743
        %v1872 = vunpack.c.l.b16 %v1744
        %v1873 = vunpack.c.l.b16 %v1745
        %v1874 = vunpack.c.l.b16 %v1746
        %v1875 = vunpack.c.l.b16 %v1747
        %v1876 = vunpack.c.l.b16 %v1748
        %v1877 = vunpack.c.l.b16 %v1749
        %v1878 = vunpack.c.l.b16 %v1750
        %v1879 = vunpack.c.l.b16 %v1751
        %v1880 = vunpack.c.l.b16 %v1752
        %v1881 = vunpack.c.l.b16 %v1753
        %v1882 = vunpack.c.l.b16 %v1754
        %v1883 = vunpack.c.l.b16 %v1755
        %v1884 = vunpack.c.l.b16 %v1756
        %v1885 = vunpack.c.l.b16 %v1757
        %v1886 = vunpack.c.l.b16 %v1758
        %v1887 = vunpack.c.l.b16 %v1759
        %v1888 = vunpack.c.l.b16 %v1760
        %v1889 = vpack.c.b16 %v1826, %v1825
        %v1890 = vpack.c.b16 %v1828, %v1827
        %v1891 = vpack.c.b16 %v1830, %v1829
        %v1892 = vpack.c.b16 %v1832, %v1831
        %v1893 = vpack.c.b16 %v1834, %v1833
        %v1894 = vpack.c.b16 %v1836, %v1835
        %v1895 = vpack.c.b16 %v1838, %v1837
        %v1896 = vpack.c.b16 %v1840, %v1839
        %v1897 = vpack.c.b16 %v1842, %v1841
        %v1898 = vpack.c.b16 %v1844, %v1843
        %v1899 = vpack.c.b16 %v1846, %v1845
        %v1900 = vpack.c.b16 %v1848, %v1847
        %v1901 = vpack.c.b16 %v1850, %v1849
        %v1902 = vpack.c.b16 %v1852, %v1851
        %v1903 = vpack.c.b16 %v1854, %v1853
        %v1904 = vpack.c.b16 %v1856, %v1855
        %v1905 = vpack.c.b16 %v1858, %v1857
        %v1906 = vpack.c.b16 %v1860, %v1859
        %v1907 = vpack.c.b16 %v1862, %v1861
        %v1908 = vpack.c.b16 %v1864, %v1863
        %v1909 = vpack.c.b16 %v1866, %v1865
        %v1910 = vpack.c.b16 %v1868, %v1867
        %v1911 = vpack.c.b16 %v1870, %v1869
        %v1912 = vpack.c.b16 %v1872, %v1871
        %v1913 = vpack.c.b16 %v1874, %v1873
        %v1914 = vpack.c.b16 %v1876, %v1875
        %v1915 = vpack.c.b16 %v1878, %v1877
        %v1916 = vpack.c.b16 %v1880, %v1879
        %v1917 = vpack.c.b16 %v1882, %v1881
        %v1918 = vpack.c.b16 %v1884, %v1883
        %v1919 = vpack.c.b16 %v1886, %v1885
        %v1920 = vpack.c.b16 %v1888, %v1887
        %1953 = vmatprep.subr.bf16.mxu0 0
        %1954 = vmatpush1.bf16.msra.mxu0 %v1889
        %1955 = vmatprep.subr.bf16.mxu0 0
        %1956 = vmatpush1.bf16.msra.mxu0 %v1890
        %1957 = vmatprep.subr.bf16.mxu0 0
        %1958 = vmatpush1.bf16.msra.mxu0 %v1891
        %1959 = vmatprep.subr.bf16.mxu0 0
        %1960 = vmatpush1.bf16.msra.mxu0 %v1892
        %1961 = vmatprep.subr.bf16.mxu0 0
        %1962 = vmatpush1.bf16.msra.mxu0 %v1893
        %1963 = vmatprep.subr.bf16.mxu0 0
        %1964 = vmatpush1.bf16.msra.mxu0 %v1894
        %1965 = vmatprep.subr.bf16.mxu0 0
        %1966 = vmatpush1.bf16.msra.mxu0 %v1895
        %1967 = vmatprep.subr.bf16.mxu0 0
        %1968 = vmatpush1.bf16.msra.mxu0 %v1896
        %1969 = vmatprep.subr.bf16.mxu0 0
        %1970 = vmatpush1.bf16.msra.mxu0 %v1897
        %1971 = vmatprep.subr.bf16.mxu0 0
        %1972 = vmatpush1.bf16.msra.mxu0 %v1898
        %1973 = vmatprep.subr.bf16.mxu0 0
        %1974 = vmatpush1.bf16.msra.mxu0 %v1899
        %1975 = vmatprep.subr.bf16.mxu0 0
        %1976 = vmatpush1.bf16.msra.mxu0 %v1900
        %1977 = vmatprep.subr.bf16.mxu0 0
        %1978 = vmatpush1.bf16.msra.mxu0 %v1901
        %1979 = vmatprep.subr.bf16.mxu0 0
        %1980 = vmatpush1.bf16.msra.mxu0 %v1902
        %1981 = vmatprep.subr.bf16.mxu0 0
        %1982 = vmatpush1.bf16.msra.mxu0 %v1903
        %1983 = vmatprep.subr.bf16.mxu0 0
        %1984 = vmatpush1.bf16.msra.mxu0 %v1904
        %1985 = vmatprep.mubr.bf16.mxu0 %v1666
        %1986 = vmatmul.mubr.bf16.gmra.mrb[0].mxu0 %v1665
        %v1987 = vpop.f32.mrb[0].mxu0
        %v1988 = vadd.f32 0.0, %v1987
        %v1989 = vpop.f32.mrb[0].mxu0
        %v1990 = vpop.f32.mrb[0].mxu0
        %v1991 = vadd.f32 0.0, %v1990
        %v1992 = vpop.f32.mrb[0].mxu0
        %1993 = vmatprep.mubr.bf16.mxu0 %v1670
        %1994 = vmatmul.mubr.bf16.gmra.mrb[0].mxu0 %v1669
        %v1995 = vpop.f32.mrb[0].mxu0
        %v1996 = vadd.f32 0.0, %v1995
        %v1997 = vpop.f32.mrb[0].mxu0
        %v1998 = vpop.f32.mrb[0].mxu0
        %v1999 = vadd.f32 0.0, %v1998
        %v2000 = vpop.f32.mrb[0].mxu0
        %2001 = vmatprep.mubr.bf16.mxu0 %v1674
        %2002 = vmatmul.mubr.bf16.gmra.mrb[0].mxu0 %v1673
        %v2003 = vpop.f32.mrb[0].mxu0
        %v2004 = vadd.f32 0.0, %v2003
        %v2005 = vpop.f32.mrb[0].mxu0
        %v2006 = vpop.f32.mrb[0].mxu0
        %v2007 = vadd.f32 0.0, %v2006
        %v2008 = vpop.f32.mrb[0].mxu0
        %2009 = vmatprep.mubr.bf16.mxu0 %v1678
        %2010 = vmatmul.mubr.bf16.gmra.mrb[0].mxu0 %v1677
        %v2011 = vpop.f32.mrb[0].mxu0
        %v2012 = vadd.f32 0.0, %v2011
        %v2013 = vpop.f32.mrb[0].mxu0
        %v2014 = vpop.f32.mrb[0].mxu0
        %v2015 = vadd.f32 0.0, %v2014
        %v2016 = vpop.f32.mrb[0].mxu0
        %2017 = vmatprep.mubr.bf16.mxu0 %v1682
        %2018 = vmatmul.mubr.bf16.gmra.mrb[0].mxu0 %v1681
        %v2019 = vpop.f32.mrb[0].mxu0
        %v2020 = vadd.f32 0.0, %v2019
        %v2021 = vpop.f32.mrb[0].mxu0
        %v2022 = vpop.f32.mrb[0].mxu0
        %v2023 = vadd.f32 0.0, %v2022
        %v2024 = vpop.f32.mrb[0].mxu0
        %2025 = vmatprep.mubr.bf16.mxu0 %v1686
        %2026 = vmatmul.mubr.bf16.gmra.mrb[0].mxu0 %v1685
        %v2027 = vpop.f32.mrb[0].mxu0
        %v2028 = vadd.f32 0.0, %v2027
        %v2029 = vpop.f32.mrb[0].mxu0
        %v2030 = vpop.f32.mrb[0].mxu0
        %v2031 = vadd.f32 0.0, %v2030
        %v2032 = vpop.f32.mrb[0].mxu0
        %2033 = vmatprep.mubr.bf16.mxu0 %v1690
        %2034 = vmatmul.mubr.bf16.gmra.mrb[0].mxu0 %v1689
        %v2035 = vpop.f32.mrb[0].mxu0
        %v2036 = vadd.f32 0.0, %v2035
        %v2037 = vpop.f32.mrb[0].mxu0
        %v2038 = vpop.f32.mrb[0].mxu0
        %v2039 = vadd.f32 0.0, %v2038
        %v2040 = vpop.f32.mrb[0].mxu0
        %2041 = vmatprep.mubr.bf16.mxu0 %v1694
        %2042 = vmatmul.mubr.bf16.gmra.mrb[0].mxu0 %v1693
        %v2043 = vpop.f32.mrb[0].mxu0
        %v2044 = vadd.f32 0.0, %v2043
        %v2045 = vpop.f32.mrb[0].mxu0
        %v2046 = vpop.f32.mrb[0].mxu0
        %v2047 = vadd.f32 0.0, %v2046
        %v2048 = vpop.f32.mrb[0].mxu0
        %2049 = vdwg.mxu0
        %2050 = vmatprep.subr.bf16.mxu0 0
        %2051 = vmatpush1.bf16.msra.mxu0 %v1905
        %2052 = vmatprep.subr.bf16.mxu0 0
        %2053 = vmatpush1.bf16.msra.mxu0 %v1906
        %2054 = vmatprep.subr.bf16.mxu0 0
        %2055 = vmatpush1.bf16.msra.mxu0 %v1907
        %2056 = vmatprep.subr.bf16.mxu0 0
        %2057 = vmatpush1.bf16.msra.mxu0 %v1908
        %2058 = vmatprep.subr.bf16.mxu0 0
        %2059 = vmatpush1.bf16.msra.mxu0 %v1909
        %2060 = vmatprep.subr.bf16.mxu0 0
        %2061 = vmatpush1.bf16.msra.mxu0 %v1910
        %2062 = vmatprep.subr.bf16.mxu0 0
        %2063 = vmatpush1.bf16.msra.mxu0 %v1911
        %2064 = vmatprep.subr.bf16.mxu0 0
        %2065 = vmatpush1.bf16.msra.mxu0 %v1912
        %2066 = vmatprep.subr.bf16.mxu0 0
        %2067 = vmatpush1.bf16.msra.mxu0 %v1913
        %2068 = vmatprep.subr.bf16.mxu0 0
        %2069 = vmatpush1.bf16.msra.mxu0 %v1914
        %2070 = vmatprep.subr.bf16.mxu0 0
        %2071 = vmatpush1.bf16.msra.mxu0 %v1915
        %2072 = vmatprep.subr.bf16.mxu0 0
        %2073 = vmatpush1.bf16.msra.mxu0 %v1916
        %2074 = vmatprep.subr.bf16.mxu0 0
        %2075 = vmatpush1.bf16.msra.mxu0 %v1917
        %2076 = vmatprep.subr.bf16.mxu0 0
        %2077 = vmatpush1.bf16.msra.mxu0 %v1918
        %2078 = vmatprep.subr.bf16.mxu0 0
        %2079 = vmatpush1.bf16.msra.mxu0 %v1919
        %2080 = vmatprep.subr.bf16.mxu0 0
        %2081 = vmatpush1.bf16.msra.mxu0 %v1920
        %2082 = vmatprep.mubr.bf16.mxu0 %v1668
        %2083 = vmatmul.mubr.bf16.gmra.mrb[0].mxu0 %v1667
        %v2084 = vpop.f32.mrb[0].mxu0
        %v2085 = vadd.f32 %v1988, %v2084
        %v2086 = vpop.f32.mrb[0].mxu0
        %v2087 = vpop.f32.mrb[0].mxu0
        %v2088 = vadd.f32 %v1991, %v2087
        %v2089 = vpop.f32.mrb[0].mxu0
        %2090 = vmatprep.mubr.bf16.mxu0 %v1672
        %2091 = vmatmul.mubr.bf16.gmra.mrb[0].mxu0 %v1671
        %v2092 = vpop.f32.mrb[0].mxu0
        %v2093 = vadd.f32 %v1996, %v2092
        %v2094 = vpop.f32.mrb[0].mxu0
        %v2095 = vpop.f32.mrb[0].mxu0
        %v2096 = vadd.f32 %v1999, %v2095
        %v2097 = vpop.f32.mrb[0].mxu0
        %2098 = vmatprep.mubr.bf16.mxu0 %v1676
        %2099 = vmatmul.mubr.bf16.gmra.mrb[0].mxu0 %v1675
        %v2100 = vpop.f32.mrb[0].mxu0
        %v2101 = vadd.f32 %v2004, %v2100
        %v2102 = vpop.f32.mrb[0].mxu0
        %v2103 = vpop.f32.mrb[0].mxu0
        %v2104 = vadd.f32 %v2007, %v2103
        %v2105 = vpop.f32.mrb[0].mxu0
        %2106 = vmatprep.mubr.bf16.mxu0 %v1680
        %2107 = vmatmul.mubr.bf16.gmra.mrb[0].mxu0 %v1679
        %v2108 = vpop.f32.mrb[0].mxu0
        %v2109 = vadd.f32 %v2012, %v2108
        %v2110 = vpop.f32.mrb[0].mxu0
        %v2111 = vpop.f32.mrb[0].mxu0
        %v2112 = vadd.f32 %v2015, %v2111
        %v2113 = vpop.f32.mrb[0].mxu0
        %2114 = vmatprep.mubr.bf16.mxu0 %v1684
        %2115 = vmatmul.mubr.bf16.gmra.mrb[0].mxu0 %v1683
        %v2116 = vpop.f32.mrb[0].mxu0
        %v2117 = vadd.f32 %v2020, %v2116
        %v2118 = vpop.f32.mrb[0].mxu0
        %v2119 = vpop.f32.mrb[0].mxu0
        %v2120 = vadd.f32 %v2023, %v2119
        %v2121 = vpop.f32.mrb[0].mxu0
        %2122 = vmatprep.mubr.bf16.mxu0 %v1688
        %2123 = vmatmul.mubr.bf16.gmra.mrb[0].mxu0 %v1687
        %v2124 = vpop.f32.mrb[0].mxu0
        %v2125 = vadd.f32 %v2028, %v2124
        %v2126 = vpop.f32.mrb[0].mxu0
        %v2127 = vpop.f32.mrb[0].mxu0
        %v2128 = vadd.f32 %v2031, %v2127
        %v2129 = vpop.f32.mrb[0].mxu0
        %2130 = vmatprep.mubr.bf16.mxu0 %v1692
        %2131 = vmatmul.mubr.bf16.gmra.mrb[0].mxu0 %v1691
        %v2132 = vpop.f32.mrb[0].mxu0
        %v2133 = vadd.f32 %v2036, %v2132
        %v2134 = vpop.f32.mrb[0].mxu0
        %v2135 = vpop.f32.mrb[0].mxu0
        %v2136 = vadd.f32 %v2039, %v2135
        %v2137 = vpop.f32.mrb[0].mxu0
        %2138 = vmatprep.mubr.bf16.mxu0 %v1696
        %2139 = vmatmul.mubr.bf16.gmra.mrb[0].mxu0 %v1695
        %v2140 = vpop.f32.mrb[0].mxu0
        %v2141 = vadd.f32 %v2044, %v2140
        %v2142 = vpop.f32.mrb[0].mxu0
        %v2143 = vpop.f32.mrb[0].mxu0
        %v2144 = vadd.f32 %v2047, %v2143
        %v2145 = vpop.f32.mrb[0].mxu0
        %2146 = vdwg.mxu0
        %v2147 = vadd.f32 %v625, %v2085
        %v2148 = vadd.f32 %v626, %v2088
        %v2149 = vadd.f32 %v627, %v2093
        %v2150 = vadd.f32 %v628, %v2096
        %v2151 = vadd.f32 %v629, %v2101
        %v2152 = vadd.f32 %v630, %v2104
        %v2153 = vadd.f32 %v631, %v2109
        %v2154 = vadd.f32 %v632, %v2112
        %v2155 = vadd.f32 %v633, %v2117
        %v2156 = vadd.f32 %v634, %v2120
        %v2157 = vadd.f32 %v635, %v2125
        %v2158 = vadd.f32 %v636, %v2128
        %v2159 = vadd.f32 %v637, %v2133
        %v2160 = vadd.f32 %v638, %v2136
        %v2161 = vadd.f32 %v639, %v2141
        %v2162 = vadd.f32 %v640, %v2144
        %v2163 = vld [vmem:[%s7] sm:$0x1]
        %v2165 = vlaneseq
        %v2166 = vshrl.u32 %v2165, 7
        %v2167 = vsub.s32 0, %v2166
        %v2168 = vrot.slane %v2163, %v2167
        %v2170 = vadd.f32 %v2147, %v2168
        %v2171 = vadd.f32 %v2148, %v2168
        %v2172 = vadd.f32 %v2149, %v2168
        %v2173 = vadd.f32 %v2150, %v2168
        %v2174 = vadd.f32 %v2151, %v2168
        %v2175 = vadd.f32 %v2152, %v2168
        %v2176 = vadd.f32 %v2153, %v2168
        %v2177 = vadd.f32 %v2154, %v2168
        %v2178 = vadd.f32 %v2155, %v2168
        %v2179 = vadd.f32 %v2156, %v2168
        %v2180 = vadd.f32 %v2157, %v2168
        %v2181 = vadd.f32 %v2158, %v2168
        %v2182 = vadd.f32 %v2159, %v2168
        %v2183 = vadd.f32 %v2160, %v2168
        %v2184 = vadd.f32 %v2161, %v2168
        %v2185 = vadd.f32 %v2162, %v2168
        %2186 = vst [vmem:[%s381] sm:$0xff] %v2170
        %2187 = vst [vmem:[%s381 + $0x8] sm:$0xff] %v2171
        %2188 = vst [vmem:[%s381 + $0x10] sm:$0xff] %v2172
        %2189 = vst [vmem:[%s381 + $0x18] sm:$0xff] %v2173
        %2190 = vst [vmem:[%s381 + $0x20] sm:$0xff] %v2174
        %2191 = vst [vmem:[%s381 + $0x28] sm:$0xff] %v2175
        %2192 = vst [vmem:[%s381 + $0x30] sm:$0xff] %v2176
        %2193 = vst [vmem:[%s381 + $0x38] sm:$0xff] %v2177
        %2194 = vst [vmem:[%s381 + $0x40] sm:$0xff] %v2178
        %2195 = vst [vmem:[%s381 + $0x48] sm:$0xff] %v2179
        %2196 = vst [vmem:[%s381 + $0x50] sm:$0xff] %v2180
        %2197 = vst [vmem:[%s381 + $0x58] sm:$0xff] %v2181
        %2198 = vst [vmem:[%s381 + $0x60] sm:$0xff] %v2182
        %2199 = vst [vmem:[%s381 + $0x68] sm:$0xff] %v2183
        %2200 = vst [vmem:[%s381 + $0x70] sm:$0xff] %v2184
        %2201 = vst [vmem:[%s381 + $0x78] sm:$0xff] %v2185
        %s2202 = sand.u32 %s208, 1
        %s2203 = scalar_lea.sflag [#allocation4], %s2202
        %s2204 = sand.u32 %s208, 1
        %s2205 = smul.addr %s2204, 128
        %s2206 = scalar_lea.vmem [#allocation11], %s2205
        // Predicated region
        $region73: #{tpu_custom_call.1} parent=51 // pred_check
          %p2207 = pneg %p218
        $region74: #{tpu_custom_call.1} parent=51 // pred_check_branch
          %2209 = sbr.rel (%p2207) target = $region76
        $region75: #{tpu_custom_call.1} parent=51 // pred_region
          %s2210 = smul.u32 16, %s27
          %s2212 = ssub.s32 2048, 2048
          %2213 = vsyncadd %s2203, %s2212
          %s2214 = smul.addr %s2210, 128
          %s2215 = scalar_lea.hbm %s8, %s2214
          %s2216 = sshll.u32 %s2206, 4
          %s2217 = int_to_ptr.vmem [resolvable:$true] %s2216
          %2222 = dma.vmem_to_hbm [thread:$0]  %s2217, 2048, %s2215, %s2203, 128, 128, 8
        $region76: #{tpu_custom_call.1} parent=51 // pred_fallthru
          _
      $region52: #{tpu_custom_call.1} parent=5 // pred_fallthru
        _
      %p2223 = scmp.le.s32.totalorder 2, %s22
      // Predicated region
      $region77: #{tpu_custom_call.1} parent=5 // pred_check
        %p2224 = pneg %p2223
      $region78: #{tpu_custom_call.1} parent=5 // pred_check_branch
        %2226 = sbr.rel (%p2224) target = $region80
      $region79: #{tpu_custom_call.1} parent=5 // pred_region
        %s2227 = ssub.s32 %s22, 2
        // Predicated region
        $region81: #{tpu_custom_call.1} parent=79 // pred_check
          %p2228 = pneg %p224
        $region82: #{tpu_custom_call.1} parent=79 // pred_check_branch
          %2230 = sbr.rel (%p2228) target = $region84
        $region83: #{tpu_custom_call.1} parent=79 // pred_region
          %s2231 = sand.u32 %s209, 1
          %s2232 = scalar_lea.sflag [#allocation4], %s2231
          %s2233 = sand.u32 %s209, 1
          %s2234 = smul.addr %s2233, 128
          %s2235 = scalar_lea.vmem [#allocation11], %s2234
          %2236 = dma.done %s2232, 2048
        $region84: #{tpu_custom_call.1} parent=79 // pred_fallthru
          _
      $region80: #{tpu_custom_call.1} parent=5 // pred_fallthru
        _
    $region6: #{tpu_custom_call.1} parent=1 // loop_footer
      %s26 = sadd.s32 1, %s22
    $region7: #{tpu_custom_call.1} parent=1 // loop_footer_branch
      %21 = sbr.rel target = $region3
    $region8: #{tpu_custom_call.1} parent=1 // loop_exit
      _
    %2237 = vsyncpa [#allocation3], 1
    %s2238 = scalar_lea.sflag [#allocation3], 1
    %2239 = vsyncpa %s2238, 1
    %2240 = vsyncpa [#allocation6], 1
    %2241 = vsyncpa [#allocation9], 1
    %2242 = vsyncpa [#allocation4], 1
    %s2243 = scalar_lea.sflag [#allocation4], 1
    %2244 = vsyncpa %s2243, 1

</llo_original>
